<compile_context>
chip_gen: v6e
topology: v6e:2x2x1
jax: 0.10.0
libtpu: 0.0.40
codegen_flags: <defaults>
</compile_context>

<pallas_src>
import functools
import math

import jax
import jax.numpy as jnp
from jax.experimental import pallas as pl
from jax.experimental.pallas import tpu as pltpu

CONV_DTYPE = jnp.bfloat16      # conv matmul operand / intermediate activation dtype
VMEM_LIMIT = 64 * 1024 * 1024  # explicit scoped-VMEM limit (fits v7x physical 64 MiB)


def _round_up(x, m):
    return (x + m - 1) // m * m


# ----------------------------------------------------------------------------
# Pallas kernels
# ----------------------------------------------------------------------------
def _linear_kernel(x_ref, w_ref, b_ref, o_ref, *, relu):
    # Operand dtype is decided by the wrapper (bf16 for the conv stage);
    # accumulation is always f32 on the MXU.
    acc = jnp.dot(x_ref[...], w_ref[...],
                  preferred_element_type=jnp.float32) + b_ref[...]
    if relu:
        acc = jnp.maximum(acc, 0.0)
    o_ref[...] = acc.astype(o_ref.dtype)


def pallas_linear(x, w, b2d, *, relu=False, out_dtype=jnp.float32, tile_m=2048):
    """y = [relu](x @ w + b).  x:(M,K)  w:(K,N)  b2d:(1,N).  M-tiled when M is large."""
    M, K = x.shape
    K2, N = w.shape
    assert K == K2, (K, K2)
    kern = functools.partial(_linear_kernel, relu=relu)

    if M <= tile_m:
        # Single whole-block invocation (typical for small RL batches / conv3).
        return pl.pallas_call(
            kern,
            out_shape=jax.ShapeDtypeStruct((M, N), out_dtype),
            in_specs=[pl.BlockSpec(memory_space=pltpu.MemorySpace.VMEM)] * 3,
            out_specs=pl.BlockSpec(memory_space=pltpu.MemorySpace.VMEM),
            compiler_params=pltpu.CompilerParams(vmem_limit_bytes=VMEM_LIMIT),
        )(x, w, b2d)

    # Large M: cdiv grid (ragged last block masked by Pallas — no pad/slice
    # copies), weights resident, pipelined; "parallel" shards across v7x TCs.
    return pl.pallas_call(
        kern,
        out_shape=jax.ShapeDtypeStruct((M, N), out_dtype),
        grid=(pl.cdiv(M, tile_m),),
        in_specs=[
            pl.BlockSpec((tile_m, K), lambda i: (i, 0)),
            pl.BlockSpec((K, N), lambda i: (0, 0)),
            pl.BlockSpec((1, N), lambda i: (0, 0)),
        ],
        out_specs=pl.BlockSpec((tile_m, N), lambda i: (i, 0)),
        compiler_params=pltpu.CompilerParams(
            dimension_semantics=("parallel",),
            vmem_limit_bytes=VMEM_LIMIT),
    )(x, w, b2d)


def _fused_head_kernel(x_ref, w1_ref, b1_ref, w2_ref, b2_ref, sup_ref,
                       dist_ref, q_ref, *, n_actions, n_atoms):
    # Stage 1: concatenated [adv_fc | value_fc] -> (B, 1024), ReLU.
    h = jnp.dot(x_ref[...], w1_ref[...], preferred_element_type=jnp.float32)
    h = jnp.maximum(h + b1_ref[...], 0.0)
    # Stage 2: block-diagonal [adv ; value] head, N padded to 128 lanes.
    out = jnp.dot(h, w2_ref[...], preferred_element_type=jnp.float32) + b2_ref[...]

    A, NA = n_atoms, n_actions
    adv = [out[:, a * A:(a + 1) * A] for a in range(NA)]      # NA x (B, A)
    val = out[:, NA * A:(NA + 1) * A]                         # (B, A)
    adv_sum = adv[0]
    for a in range(1, NA):
        adv_sum = adv_sum + adv[a]
    adv_mean = adv_sum * (1.0 / NA)

    # Hoisted once (JAX doesn't CSE broadcast_in_dim inside the unrolled loop).
    sup_b = jnp.broadcast_to(sup_ref[...], val.shape)         # (B, A)

    # TODO(synk): for Rainbow-size n_atoms (51) lane-align each action block to
    # 128 lanes so the per-action slices/reductions avoid cross-lane shuffles.
    dist_parts, q_parts = [], []
    for a in range(NA):
        mass = val + adv[a] - adv_mean
        m = jnp.max(mass, axis=-1, keepdims=True)             # stable softmax
        e = jnp.exp(mass - m)
        inv = pl.reciprocal(jnp.sum(e, axis=-1, keepdims=True), approx=True)
        p = jnp.maximum(e * inv, 0.001)                       # clamp(min=0.001)
        dist_parts.append(p)
        q_parts.append(jnp.sum(p * sup_b, axis=-1, keepdims=True))
    dist_ref[...] = jnp.concatenate(dist_parts, axis=-1)      # (B, NA*A)
    q_ref[...] = jnp.concatenate(q_parts, axis=-1)            # (B, NA)


def pallas_dueling_head(x, w1, b1_2d, w2, b2_2d, sup2d, n_actions, n_atoms,
                        *, tile_b=256):
    B, K = x.shape
    n_hidden = w1.shape[1]
    n_pad = w2.shape[1]
    kern = functools.partial(_fused_head_kernel,
                             n_actions=n_actions, n_atoms=n_atoms)
    out_shapes = (jax.ShapeDtypeStruct((B, n_actions * n_atoms), jnp.float32),
                  jax.ShapeDtypeStruct((B, n_actions), jnp.float32))

    if B <= tile_b:
        dist_flat, q = pl.pallas_call(
            kern,
            out_shape=out_shapes,
            in_specs=[pl.BlockSpec(memory_space=pltpu.MemorySpace.VMEM)] * 6,
            out_specs=(pl.BlockSpec(memory_space=pltpu.MemorySpace.VMEM),
                       pl.BlockSpec(memory_space=pltpu.MemorySpace.VMEM)),
            compiler_params=pltpu.CompilerParams(vmem_limit_bytes=VMEM_LIMIT),
        )(x, w1, b1_2d, w2, b2_2d, sup2d)
    else:
        # Tile over batch rows; weights/bias/support stay resident (constant
        # index_map). "parallel" shards the batch across v7x's two TensorCores.
        dist_flat, q = pl.pallas_call(
            kern,
            out_shape=out_shapes,
            grid=(pl.cdiv(B, tile_b),),
            in_specs=[
                pl.BlockSpec((tile_b, K), lambda i: (i, 0)),
                pl.BlockSpec((K, n_hidden), lambda i: (0, 0)),
                pl.BlockSpec((1, n_hidden), lambda i: (0, 0)),
                pl.BlockSpec((n_hidden, n_pad), lambda i: (0, 0)),
                pl.BlockSpec((1, n_pad), lambda i: (0, 0)),
                pl.BlockSpec((1, n_atoms), lambda i: (0, 0)),
            ],
            out_specs=(
                pl.BlockSpec((tile_b, n_actions * n_atoms), lambda i: (i, 0)),
                pl.BlockSpec((tile_b, n_actions), lambda i: (i, 0)),
            ),
            compiler_params=pltpu.CompilerParams(
                dimension_semantics=("parallel",),
                vmem_limit_bytes=VMEM_LIMIT),
        )(x, w1, b1_2d, w2, b2_2d, sup2d)
    return dist_flat.reshape(B, n_actions, n_atoms), q


# ----------------------------------------------------------------------------
# Conv-as-matmul glue (im2col, fused under jit; patches streamed as bf16)
# ----------------------------------------------------------------------------
def _im2col(x_nhwc, kh, kw, stride):
    N, H, W, C = x_nhwc.shape
    oh = (H - kh) // stride + 1
    ow = (W - kw) // stride + 1
    cols = []
    for i in range(kh):
        for j in range(kw):
            cols.append(
                x_nhwc[:, i:i + stride * oh:stride, j:j + stride * ow:stride, :]
            )
    p = jnp.stack(cols, axis=3)                       # (N, oh, ow, kh*kw, C)
    return p.reshape(N * oh * ow, kh * kw * C), oh, ow


def conv2d_relu(x_nhwc, wmat, b2d, kh, kw, stride, *, out_dtype):
    patches, oh, ow = _im2col(x_nhwc, kh, kw, stride)   # stays in x_nhwc's dtype
    y = pallas_linear(patches, wmat, b2d, relu=True, out_dtype=out_dtype)
    N = x_nhwc.shape[0]
    return y.reshape(N, oh, ow, wmat.shape[1])


# ----------------------------------------------------------------------------
# Parameter construction (deterministic, mirrors the PyTorch __init__)
# ----------------------------------------------------------------------------
def conv2d_size_out(size, kernel_size=5, stride=2):
    return (size - kernel_size) // stride + 1


def _f_noise(x):
    return jnp.sign(x) * jnp.sqrt(jnp.abs(x))


def init_conv(key, cout, cin, k):
    # kaiming_normal_(nonlinearity='relu'), bias zero
    fan_in = cin * k * k
    std = math.sqrt(2.0 / fan_in)
    w = (jax.random.normal(key, (cout, cin, k, k)) * std).astype(jnp.float32)
    b = jnp.zeros((cout,), jnp.float32)
    return w, b


def init_noisy(key, n_in, n_out):
    # Effective weight/bias: mu + sigma * epsilon (noise is a fixed buffer at
    # forward time).  Weight returned as (n_in, n_out) for x @ W.
    k1, k2, k3, k4 = jax.random.split(key, 4)
    bound = 1.0 / math.sqrt(n_in)
    mu_w = jax.random.uniform(k1, (n_out, n_in), minval=-bound, maxval=bound)
    sigma_w = jnp.full((n_out, n_in), 0.5 / math.sqrt(n_in))
    mu_b = jax.random.uniform(k2, (n_out,), minval=-bound, maxval=bound)
    sigma_b = jnp.full((n_out,), 0.5 / math.sqrt(n_out))
    eps_i = _f_noise(jax.random.normal(k3, (n_in,)))
    eps_j = _f_noise(jax.random.normal(k4, (n_out,)))
    w_eps = jnp.outer(eps_j, eps_i)
    W = (mu_w + sigma_w * w_eps).astype(jnp.float32)
    B = (mu_b + sigma_b * eps_j).astype(jnp.float32)
    return W.T, B


def _conv_wmat(w_oihw):
    cout, cin, kh, kw = w_oihw.shape
    return jnp.transpose(w_oihw, (2, 3, 1, 0)).reshape(kh * kw * cin, cout)


class PallasModel:
    def __init__(self, state_shape, n_actions, n_atoms, support, key):
        width, height, channel = state_shape
        self.n_actions = n_actions
        self.n_atoms = n_atoms

        convw = conv2d_size_out(conv2d_size_out(width, 8, 4), 4, 2)
        convh = conv2d_size_out(conv2d_size_out(height, 8, 4), 4, 2)
        convw = conv2d_size_out(convw, 3, 1)
        convh = conv2d_size_out(convh, 3, 1)
        linear_input_size = convw * convh * 64

        ks = jax.random.split(key, 7)
        w1, b1 = init_conv(ks[0], 32, channel, 8)
        w2, b2 = init_conv(ks[1], 64, 32, 4)
        w3, b3 = init_conv(ks[2], 64, 64, 3)
        adv_fc_w, adv_fc_b = init_noisy(ks[3], linear_input_size, 512)
        adv_w, adv_b = init_noisy(ks[4], 512, n_actions * n_atoms)
        val_fc_w, val_fc_b = init_noisy(ks[5], linear_input_size, 512)
        val_w, val_b = init_noisy(ks[6], 512, n_atoms)

        # Conv weights in matmul layout, bf16 operands (f32 accumulation in-kernel).
        # Input /255 folded into conv1 weight (exact: (x/255)@W + b == x@(W/255) + b).
        self.w1m = (_conv_wmat(w1) * (1.0 / 255.0)).astype(CONV_DTYPE)
        self.b1_2d = b1.reshape(1, -1)
        self.w2m = _conv_wmat(w2).astype(CONV_DTYPE)
        self.b2_2d = b2.reshape(1, -1)
        self.w3m = _conv_wmat(w3).astype(CONV_DTYPE)
        self.b3_2d = b3.reshape(1, -1)

        # Fused FC stage 1: [adv_fc | value_fc] -> one (K, 1024) matmul.
        # Rows permuted from PyTorch's CHW flatten order to the NHWC flatten
        # order so the wrapper needs no transpose before the head.
        fc_w_chw = jnp.concatenate([adv_fc_w, val_fc_w], axis=1)      # (K, 1024)
        hw = convh * convw
        perm = (jnp.arange(64)[None, None, :] * hw
                + jnp.arange(convh)[:, None, None] * convw
                + jnp.arange(convw)[None, :, None]).reshape(-1)       # nhwc -> chw
        self.fc_w = fc_w_chw[perm]
        self.fc_b2d = jnp.concatenate([adv_fc_b, val_fc_b]).reshape(1, -1)

        # Fused FC stage 2: block-diagonal [adv ; value], lanes padded to 128.
        n_out = n_actions * n_atoms + n_atoms
        n_pad = _round_up(max(n_out, 128), 128)
        head_w = jnp.zeros((1024, n_pad), jnp.float32)
        head_w = head_w.at[:512, :n_actions * n_atoms].set(adv_w)
        head_w = head_w.at[512:, n_actions * n_atoms:n_out].set(val_w)
        head_b = jnp.zeros((n_pad,), jnp.float32)
        head_b = head_b.at[:n_actions * n_atoms].set(adv_b)
        head_b = head_b.at[n_actions * n_atoms:n_out].set(val_b)
        self.head_w = head_w
        self.head_b2d = head_b.reshape(1, -1)

        self.sup2d = jnp.asarray(support, jnp.float32).reshape(1, -1)

        self._jit_forward = jax.jit(self._forward_pair)

    def _forward_pair(self, x_nchw):
        N = x_nchw.shape[0]
        # NCHW -> NHWC, cast to bf16 (conv stage is HBM-bandwidth bound).
        x = jnp.transpose(x_nchw, (0, 2, 3, 1)).astype(CONV_DTYPE)
        x = conv2d_relu(x, self.w1m, self.b1_2d, 8, 8, 4, out_dtype=CONV_DTYPE)
        x = conv2d_relu(x, self.w2m, self.b2_2d, 4, 4, 2, out_dtype=CONV_DTYPE)
        x = conv2d_relu(x, self.w3m, self.b3_2d, 3, 3, 1, out_dtype=jnp.float32)
        # NHWC flatten; fc_w rows were permuted at init to match PyTorch's CHW order.
        x = x.reshape(N, -1)
        dist, q = pallas_dueling_head(
            x, self.fc_w, self.fc_b2d, self.head_w, self.head_b2d,
            self.sup2d, self.n_actions, self.n_atoms)
        return dist, q

    def forward(self, x_nchw):
        return self._jit_forward(x_nchw)[0]

    def get_q_value(self, x_nchw):
        return self._jit_forward(x_nchw)[1]


# ----------------------------------------------------------------------------
if __name__ == "__main__":
    key = jax.random.PRNGKey(0)
    k_params, k_input = jax.random.split(key)

    # Small shapes consistent with the conv stack (min spatial = 36 -> 1x1 features)
    batch, channel, width, height = 2, 4, 36, 36
    n_actions, n_atoms = 4, 8
    support = jnp.linspace(-10.0, 10.0, n_atoms, dtype=jnp.float32)

    model = PallasModel((width, height, channel), n_actions, n_atoms, support,
                        k_params)

    x = jax.random.uniform(
        k_input, (batch, channel, height, width), minval=0.0, maxval=255.0
    ).astype(jnp.float32)

    dist = jax.block_until_ready(model.forward(x))
    assert dist.shape == (batch, n_actions, n_atoms)
    assert bool(jnp.all(dist >= 0.001)) and bool(jnp.all(jnp.isfinite(dist)))
    # per-action softmax sums to ~1 (modulo the clamp, as in the PyTorch model)
    assert bool(jnp.all(jnp.abs(dist.sum(-1) - 1.0) < 0.05))

    q = jax.block_until_ready(model.get_q_value(x))
    assert q.shape == (batch, n_actions)
    assert bool(jnp.all(jnp.isfinite(q)))

    print("KERNEL_OK")
</pallas_src>

<mosaic_0001>
module attributes {stable_mosaic.version = 11 : i64} {
  func.func @_linear_kernel(%arg0: memref<128x256xbf16, #tpu.memory_space<vmem>>, %arg1: memref<256x32xbf16, #tpu.memory_space<vmem>>, %arg2: memref<1x32xf32, #tpu.memory_space<vmem>>, %arg3: memref<128x32xbf16, #tpu.memory_space<vmem>>) attributes {dimension_semantics = [], scalar_prefetch = 0 : i64, scratch_operands = 0 : i64, tpu.core_type = #tpu.core_type<tc>} {
    %c0 = arith.constant 0 : index
    %c0_0 = arith.constant 0 : index
    %0 = vector.load %arg0[%c0, %c0_0] : memref<128x256xbf16, #tpu.memory_space<vmem>>, vector<128x256xbf16>
    %c0_1 = arith.constant 0 : index
    %c0_2 = arith.constant 0 : index
    %1 = vector.load %arg1[%c0_1, %c0_2] : memref<256x32xbf16, #tpu.memory_space<vmem>>, vector<256x32xbf16>
    %cst = arith.constant dense<0.000000e+00> : vector<128x32xf32>
    %2 = tpu.matmul %0, %1, %cst {dimension_numbers = #tpu.dot_dimension_numbers<[1], [0], [0], [1], [0, 0, 1, 1], [], []>} : vector<128x256xbf16>, vector<256x32xbf16>, vector<128x32xf32> -> vector<128x32xf32>
    %c0_3 = arith.constant 0 : index
    %c0_4 = arith.constant 0 : index
    %3 = vector.load %arg2[%c0_3, %c0_4] : memref<1x32xf32, #tpu.memory_space<vmem>>, vector<1x32xf32>
    %4 = vector.broadcast %3 : vector<1x32xf32> to vector<128x32xf32>
    %5 = arith.addf %2, %4 : vector<128x32xf32>
    %cst_5 = arith.constant 0.000000e+00 : f32
    %6 = vector.broadcast %cst_5 : f32 to vector<128x32xf32>
    %7 = arith.maximumf %5, %6 : vector<128x32xf32>
    %8 = arith.truncf %7 : vector<128x32xf32> to vector<128x32xbf16>
    %c0_6 = arith.constant 0 : index
    %c0_7 = arith.constant 0 : index
    %9 = vector.load %arg3[%c0_6, %c0_7] : memref<128x32xbf16, #tpu.memory_space<vmem>>, vector<128x32xbf16>
    tpu.vector_store %arg3[%c0_6, %c0_7], %8 {strides = array<i32>} : memref<128x32xbf16, #tpu.memory_space<vmem>>, vector<128x32xbf16>,
    return
  }
}

module attributes {stable_mosaic.version = 11 : i64} {
  func.func @_linear_kernel(%arg0: memref<18x512xbf16, #tpu.memory_space<vmem>>, %arg1: memref<512x64xbf16, #tpu.memory_space<vmem>>, %arg2: memref<1x64xf32, #tpu.memory_space<vmem>>, %arg3: memref<18x64xbf16, #tpu.memory_space<vmem>>) attributes {dimension_semantics = [], scalar_prefetch = 0 : i64, scratch_operands = 0 : i64, tpu.core_type = #tpu.core_type<tc>} {
    %c0 = arith.constant 0 : index
    %c0_0 = arith.constant 0 : index
    %0 = vector.load %arg0[%c0, %c0_0] : memref<18x512xbf16, #tpu.memory_space<vmem>>, vector<18x512xbf16>
    %c0_1 = arith.constant 0 : index
    %c0_2 = arith.constant 0 : index
    %1 = vector.load %arg1[%c0_1, %c0_2] : memref<512x64xbf16, #tpu.memory_space<vmem>>, vector<512x64xbf16>
    %cst = arith.constant dense<0.000000e+00> : vector<18x64xf32>
    %2 = tpu.matmul %0, %1, %cst {dimension_numbers = #tpu.dot_dimension_numbers<[1], [0], [0], [1], [0, 0, 1, 1], [], []>} : vector<18x512xbf16>, vector<512x64xbf16>, vector<18x64xf32> -> vector<18x64xf32>
    %c0_3 = arith.constant 0 : index
    %c0_4 = arith.constant 0 : index
    %3 = vector.load %arg2[%c0_3, %c0_4] : memref<1x64xf32, #tpu.memory_space<vmem>>, vector<1x64xf32>
    %4 = vector.broadcast %3 : vector<1x64xf32> to vector<18x64xf32>
    %5 = arith.addf %2, %4 : vector<18x64xf32>
    %cst_5 = arith.constant 0.000000e+00 : f32
    %6 = vector.broadcast %cst_5 : f32 to vector<18x64xf32>
    %7 = arith.maximumf %5, %6 : vector<18x64xf32>
    %8 = arith.truncf %7 : vector<18x64xf32> to vector<18x64xbf16>
    %c0_6 = arith.constant 0 : index
    %c0_7 = arith.constant 0 : index
    %9 = vector.load %arg3[%c0_6, %c0_7] : memref<18x64xbf16, #tpu.memory_space<vmem>>, vector<18x64xbf16>
    tpu.vector_store %arg3[%c0_6, %c0_7], %8 {strides = array<i32>} : memref<18x64xbf16, #tpu.memory_space<vmem>>, vector<18x64xbf16>,
    return
  }
}

module attributes {stable_mosaic.version = 11 : i64} {
  func.func @_linear_kernel(%arg0: memref<2x576xbf16, #tpu.memory_space<vmem>>, %arg1: memref<576x64xbf16, #tpu.memory_space<vmem>>, %arg2: memref<1x64xf32, #tpu.memory_space<vmem>>, %arg3: memref<2x64xf32, #tpu.memory_space<vmem>>) attributes {dimension_semantics = [], scalar_prefetch = 0 : i64, scratch_operands = 0 : i64, tpu.core_type = #tpu.core_type<tc>} {
    %c0 = arith.constant 0 : index
    %c0_0 = arith.constant 0 : index
    %0 = vector.load %arg0[%c0, %c0_0] : memref<2x576xbf16, #tpu.memory_space<vmem>>, vector<2x576xbf16>
    %c0_1 = arith.constant 0 : index
    %c0_2 = arith.constant 0 : index
    %1 = vector.load %arg1[%c0_1, %c0_2] : memref<576x64xbf16, #tpu.memory_space<vmem>>, vector<576x64xbf16>
    %cst = arith.constant dense<0.000000e+00> : vector<2x64xf32>
    %2 = tpu.matmul %0, %1, %cst {dimension_numbers = #tpu.dot_dimension_numbers<[1], [0], [0], [1], [0, 0, 1, 1], [], []>} : vector<2x576xbf16>, vector<576x64xbf16>, vector<2x64xf32> -> vector<2x64xf32>
    %c0_3 = arith.constant 0 : index
    %c0_4 = arith.constant 0 : index
    %3 = vector.load %arg2[%c0_3, %c0_4] : memref<1x64xf32, #tpu.memory_space<vmem>>, vector<1x64xf32>
    %4 = vector.broadcast %3 : vector<1x64xf32> to vector<2x64xf32>
    %5 = arith.addf %2, %4 : vector<2x64xf32>
    %cst_5 = arith.constant 0.000000e+00 : f32
    %6 = vector.broadcast %cst_5 : f32 to vector<2x64xf32>
    %7 = arith.maximumf %5, %6 : vector<2x64xf32>
    %c0_6 = arith.constant 0 : index
    %c0_7 = arith.constant 0 : index
    %8 = vector.load %arg3[%c0_6, %c0_7] : memref<2x64xf32, #tpu.memory_space<vmem>>, vector<2x64xf32>
    tpu.vector_store %arg3[%c0_6, %c0_7], %7 {strides = array<i32>} : memref<2x64xf32, #tpu.memory_space<vmem>>, vector<2x64xf32>,
    return
  }
}

module attributes {stable_mosaic.version = 11 : i64} {
  func.func @_fused_head_kernel(%arg0: memref<2x64xf32, #tpu.memory_space<vmem>>, %arg1: memref<64x1024xf32, #tpu.memory_space<vmem>>, %arg2: memref<1x1024xf32, #tpu.memory_space<vmem>>, %arg3: memref<1024x128xf32, #tpu.memory_space<vmem>>, %arg4: memref<1x128xf32, #tpu.memory_space<vmem>>, %arg5: memref<1x8xf32, #tpu.memory_space<vmem>>, %arg6: memref<2x32xf32, #tpu.memory_space<vmem>>, %arg7: memref<2x4xf32, #tpu.memory_space<vmem>>) attributes {dimension_semantics = [], scalar_prefetch = 0 : i64, scratch_operands = 0 : i64, tpu.core_type = #tpu.core_type<tc>} {
    %c0 = arith.constant 0 : index
    %c0_0 = arith.constant 0 : index
    %0 = vector.load %arg0[%c0, %c0_0] : memref<2x64xf32, #tpu.memory_space<vmem>>, vector<2x64xf32>
    %c0_1 = arith.constant 0 : index
    %c0_2 = arith.constant 0 : index
    %1 = vector.load %arg1[%c0_1, %c0_2] : memref<64x1024xf32, #tpu.memory_space<vmem>>, vector<64x1024xf32>
    %cst = arith.constant dense<0.000000e+00> : vector<2x1024xf32>
    %2 = tpu.matmul %0, %1, %cst {dimension_numbers = #tpu.dot_dimension_numbers<[1], [0], [0], [1], [0, 0, 1, 1], [], []>} : vector<2x64xf32>, vector<64x1024xf32>, vector<2x1024xf32> -> vector<2x1024xf32>
    %c0_3 = arith.constant 0 : index
    %c0_4 = arith.constant 0 : index
    %3 = vector.load %arg2[%c0_3, %c0_4] : memref<1x1024xf32, #tpu.memory_space<vmem>>, vector<1x1024xf32>
    %4 = vector.broadcast %3 : vector<1x1024xf32> to vector<2x1024xf32>
    %5 = arith.addf %2, %4 : vector<2x1024xf32>
    %cst_5 = arith.constant 0.000000e+00 : f32
    %6 = vector.broadcast %cst_5 : f32 to vector<2x1024xf32>
    %7 = arith.maximumf %5, %6 : vector<2x1024xf32>
    %c0_6 = arith.constant 0 : index
    %c0_7 = arith.constant 0 : index
    %8 = vector.load %arg3[%c0_6, %c0_7] : memref<1024x128xf32, #tpu.memory_space<vmem>>, vector<1024x128xf32>
    %cst_8 = arith.constant dense<0.000000e+00> : vector<2x128xf32>
    %9 = tpu.matmul %7, %8, %cst_8 {dimension_numbers = #tpu.dot_dimension_numbers<[1], [0], [0], [1], [0, 0, 1, 1], [], []>} : vector<2x1024xf32>, vector<1024x128xf32>, vector<2x128xf32> -> vector<2x128xf32>
    %c0_9 = arith.constant 0 : index
    %c0_10 = arith.constant 0 : index
    %10 = vector.load %arg4[%c0_9, %c0_10] : memref<1x128xf32, #tpu.memory_space<vmem>>, vector<1x128xf32>
    %11 = vector.broadcast %10 : vector<1x128xf32> to vector<2x128xf32>
    %12 = arith.addf %9, %11 : vector<2x128xf32>
    %13 = vector.extract_strided_slice %12 {offsets = [0, 0], sizes = [2, 8], strides = [1, 1]} : vector<2x128xf32> to vector<2x8xf32>
    %14 = vector.extract_strided_slice %12 {offsets = [0, 8], sizes = [2, 8], strides = [1, 1]} : vector<2x128xf32> to vector<2x8xf32>
    %15 = vector.extract_strided_slice %12 {offsets = [0, 16], sizes = [2, 8], strides = [1, 1]} : vector<2x128xf32> to vector<2x8xf32>
    %16 = vector.extract_strided_slice %12 {offsets = [0, 24], sizes = [2, 8], strides = [1, 1]} : vector<2x128xf32> to vector<2x8xf32>
    %17 = vector.extract_strided_slice %12 {offsets = [0, 32], sizes = [2, 8], strides = [1, 1]} : vector<2x128xf32> to vector<2x8xf32>
    %18 = arith.addf %13, %14 : vector<2x8xf32>
    %19 = arith.addf %18, %15 : vector<2x8xf32>
    %20 = arith.addf %19, %16 : vector<2x8xf32>
    %cst_11 = arith.constant 2.500000e-01 : f32
    %21 = vector.broadcast %cst_11 : f32 to vector<2x8xf32>
    %22 = arith.mulf %20, %21 : vector<2x8xf32>
    %c0_12 = arith.constant 0 : index
    %c0_13 = arith.constant 0 : index
    %23 = vector.load %arg5[%c0_12, %c0_13] : memref<1x8xf32, #tpu.memory_space<vmem>>, vector<1x8xf32>
    %24 = vector.shape_cast %23 : vector<1x8xf32> to vector<1x8xf32>
    %25 = vector.broadcast %24 : vector<1x8xf32> to vector<2x8xf32>
    %26 = arith.addf %17, %13 : vector<2x8xf32>
    %27 = arith.subf %26, %22 : vector<2x8xf32>
    %cst_14 = arith.constant dense<0xFF800000> : vector<2xf32>
    %28 = vector.multi_reduction <maximumf>, %27, %cst_14 [1] : vector<2x8xf32> to vector<2xf32>
    %29 = vector.shape_cast %28 : vector<2xf32> to vector<2x1xf32>
    %30 = vector.broadcast %29 : vector<2x1xf32> to vector<2x8xf32>
    %31 = arith.subf %27, %30 : vector<2x8xf32>
    %32 = math.exp %31 : vector<2x8xf32>
    %cst_15 = arith.constant dense<0.000000e+00> : vector<2xf32>
    %33 = vector.multi_reduction <add>, %32, %cst_15 [1] : vector<2x8xf32> to vector<2xf32>
    %34 = vector.shape_cast %33 : vector<2xf32> to vector<2x1xf32>
    %35 = tpu.reciprocal %34 {approx = true} : vector<2x1xf32> -> vector<2x1xf32>
    %36 = vector.broadcast %35 : vector<2x1xf32> to vector<2x8xf32>
    %37 = arith.mulf %32, %36 : vector<2x8xf32>
    %cst_16 = arith.constant 1.000000e-03 : f32
    %38 = vector.broadcast %cst_16 : f32 to vector<2x8xf32>
    %39 = arith.maximumf %37, %38 : vector<2x8xf32>
    %40 = arith.mulf %39, %25 : vector<2x8xf32>
    %cst_17 = arith.constant dense<0.000000e+00> : vector<2xf32>
    %41 = vector.multi_reduction <add>, %40, %cst_17 [1] : vector<2x8xf32> to vector<2xf32>
    %42 = vector.shape_cast %41 : vector<2xf32> to vector<2x1xf32>
    %43 = arith.addf %17, %14 : vector<2x8xf32>
    %44 = arith.subf %43, %22 : vector<2x8xf32>
    %cst_18 = arith.constant dense<0xFF800000> : vector<2xf32>
    %45 = vector.multi_reduction <maximumf>, %44, %cst_18 [1] : vector<2x8xf32> to vector<2xf32>
    %46 = vector.shape_cast %45 : vector<2xf32> to vector<2x1xf32>
    %47 = vector.broadcast %46 : vector<2x1xf32> to vector<2x8xf32>
    %48 = arith.subf %44, %47 : vector<2x8xf32>
    %49 = math.exp %48 : vector<2x8xf32>
    %cst_19 = arith.constant dense<0.000000e+00> : vector<2xf32>
    %50 = vector.multi_reduction <add>, %49, %cst_19 [1] : vector<2x8xf32> to vector<2xf32>
    %51 = vector.shape_cast %50 : vector<2xf32> to vector<2x1xf32>
    %52 = tpu.reciprocal %51 {approx = true} : vector<2x1xf32> -> vector<2x1xf32>
    %53 = vector.broadcast %52 : vector<2x1xf32> to vector<2x8xf32>
    %54 = arith.mulf %49, %53 : vector<2x8xf32>
    %cst_20 = arith.constant 1.000000e-03 : f32
    %55 = vector.broadcast %cst_20 : f32 to vector<2x8xf32>
    %56 = arith.maximumf %54, %55 : vector<2x8xf32>
    %57 = arith.mulf %56, %25 : vector<2x8xf32>
    %cst_21 = arith.constant dense<0.000000e+00> : vector<2xf32>
    %58 = vector.multi_reduction <add>, %57, %cst_21 [1] : vector<2x8xf32> to vector<2xf32>
    %59 = vector.shape_cast %58 : vector<2xf32> to vector<2x1xf32>
    %60 = arith.addf %17, %15 : vector<2x8xf32>
    %61 = arith.subf %60, %22 : vector<2x8xf32>
    %cst_22 = arith.constant dense<0xFF800000> : vector<2xf32>
    %62 = vector.multi_reduction <maximumf>, %61, %cst_22 [1] : vector<2x8xf32> to vector<2xf32>
    %63 = vector.shape_cast %62 : vector<2xf32> to vector<2x1xf32>
    %64 = vector.broadcast %63 : vector<2x1xf32> to vector<2x8xf32>
    %65 = arith.subf %61, %64 : vector<2x8xf32>
    %66 = math.exp %65 : vector<2x8xf32>
    %cst_23 = arith.constant dense<0.000000e+00> : vector<2xf32>
    %67 = vector.multi_reduction <add>, %66, %cst_23 [1] : vector<2x8xf32> to vector<2xf32>
    %68 = vector.shape_cast %67 : vector<2xf32> to vector<2x1xf32>
    %69 = tpu.reciprocal %68 {approx = true} : vector<2x1xf32> -> vector<2x1xf32>
    %70 = vector.broadcast %69 : vector<2x1xf32> to vector<2x8xf32>
    %71 = arith.mulf %66, %70 : vector<2x8xf32>
    %cst_24 = arith.constant 1.000000e-03 : f32
    %72 = vector.broadcast %cst_24 : f32 to vector<2x8xf32>
    %73 = arith.maximumf %71, %72 : vector<2x8xf32>
    %74 = arith.mulf %73, %25 : vector<2x8xf32>
    %cst_25 = arith.constant dense<0.000000e+00> : vector<2xf32>
    %75 = vector.multi_reduction <add>, %74, %cst_25 [1] : vector<2x8xf32> to vector<2xf32>
    %76 = vector.shape_cast %75 : vector<2xf32> to vector<2x1xf32>
    %77 = arith.addf %17, %16 : vector<2x8xf32>
    %78 = arith.subf %77, %22 : vector<2x8xf32>
    %cst_26 = arith.constant dense<0xFF800000> : vector<2xf32>
    %79 = vector.multi_reduction <maximumf>, %78, %cst_26 [1] : vector<2x8xf32> to vector<2xf32>
    %80 = vector.shape_cast %79 : vector<2xf32> to vector<2x1xf32>
    %81 = vector.broadcast %80 : vector<2x1xf32> to vector<2x8xf32>
    %82 = arith.subf %78, %81 : vector<2x8xf32>
    %83 = math.exp %82 : vector<2x8xf32>
    %cst_27 = arith.constant dense<0.000000e+00> : vector<2xf32>
    %84 = vector.multi_reduction <add>, %83, %cst_27 [1] : vector<2x8xf32> to vector<2xf32>
    %85 = vector.shape_cast %84 : vector<2xf32> to vector<2x1xf32>
    %86 = tpu.reciprocal %85 {approx = true} : vector<2x1xf32> -> vector<2x1xf32>
    %87 = vector.broadcast %86 : vector<2x1xf32> to vector<2x8xf32>
    %88 = arith.mulf %83, %87 : vector<2x8xf32>
    %cst_28 = arith.constant 1.000000e-03 : f32
    %89 = vector.broadcast %cst_28 : f32 to vector<2x8xf32>
    %90 = arith.maximumf %88, %89 : vector<2x8xf32>
    %91 = arith.mulf %90, %25 : vector<2x8xf32>
    %cst_29 = arith.constant dense<0.000000e+00> : vector<2xf32>
    %92 = vector.multi_reduction <add>, %91, %cst_29 [1] : vector<2x8xf32> to vector<2xf32>
    %93 = vector.shape_cast %92 : vector<2xf32> to vector<2x1xf32>
    %94 = tpu.concatenate %39, %56, %73, %90 in 1 : vector<2x8xf32>, vector<2x8xf32>, vector<2x8xf32>, vector<2x8xf32> -> vector<2x32xf32>
    %c0_30 = arith.constant 0 : index
    %c0_31 = arith.constant 0 : index
    %95 = vector.load %arg6[%c0_30, %c0_31] : memref<2x32xf32, #tpu.memory_space<vmem>>, vector<2x32xf32>
    tpu.vector_store %arg6[%c0_30, %c0_31], %94 {strides = array<i32>} : memref<2x32xf32, #tpu.memory_space<vmem>>, vector<2x32xf32>,
    %96 = tpu.concatenate %42, %59, %76, %93 in 1 : vector<2x1xf32>, vector<2x1xf32>, vector<2x1xf32>, vector<2x1xf32> -> vector<2x4xf32>
    %c0_32 = arith.constant 0 : index
    %c0_33 = arith.constant 0 : index
    %97 = vector.load %arg7[%c0_32, %c0_33] : memref<2x4xf32, #tpu.memory_space<vmem>>, vector<2x4xf32>
    tpu.vector_store %arg7[%c0_32, %c0_33], %96 {strides = array<i32>} : memref<2x4xf32, #tpu.memory_space<vmem>>, vector<2x4xf32>,
    return
  }
}

</mosaic_0001>

<llo_original>
// kernel: _forward_pair.4
$region0: #{_forward_pair.4}
  #allocation0 [shape = 'u32[]', space=smem, size = 0x4, offset = 0x4, fixed_abs, tag = 'smem constant byte address 0x4 - core index']
  #allocation1 [shape = 'u32[144,128]{1,0:T(1,128)}', space=vmem, size = 0x12000, scoped, tag = 'internal scratch']
  %s0 = inlined_call_operand.vmem [shape: bf16[128,256], index: 0, kind: input, shape index: {}]
  %s1 = inlined_call_operand.vmem [shape: bf16[256,32], index: 1, kind: input, shape index: {}]
  %s2 = inlined_call_operand.vmem [shape: f32[1,32], index: 2, kind: input, shape index: {}]
  %s3 = inlined_call_operand.vmem [shape: bf16[128,32], index: 3, kind: output, shape index: {}]
  %s4 = sld [smem:[#allocation0]]
  $region22: #{_forward_pair.4} parent=0
    _
  %s6 = ssub.s32 1, %s4
  %s7 = scalar_select 0, %s6, %s4
  // Predicated region
  $region2: #{_forward_pair.4} parent=0 // pred_check
    _
  $region3: #{_forward_pair.4} parent=0 // pred_check_branch
    %9 = sbr.rel (0) target = $region5
  $region4: #{_forward_pair.4} parent=0 // pred_region
    _
  $region5: #{_forward_pair.4} parent=0 // pred_fallthru
    _
  // Predicated region
  $region6: #{_forward_pair.4} parent=0 // pred_check
    _
  $region7: #{_forward_pair.4} parent=0 // pred_check_branch
    %11 = sbr.rel (0) target = $region9
  $region8: #{_forward_pair.4} parent=0 // pred_region
    _
  $region9: #{_forward_pair.4} parent=0 // pred_fallthru
    _
  // Predicated region
  $region10: #{_forward_pair.4} parent=0 // pred_check
    _
  $region11: #{_forward_pair.4} parent=0 // pred_check_branch
    %13 = sbr.rel (0) target = $region13
  $region12: #{_forward_pair.4} parent=0 // pred_region
    _
  $region13: #{_forward_pair.4} parent=0 // pred_fallthru
    _
  %v15 = vld [vmem:[%s0] sm:$0xff]
  %v16 = vld [vmem:[%s0 + $0x8] sm:$0xff]
  %v17 = vld [vmem:[%s0 + $0x10] sm:$0xff]
  %v18 = vld [vmem:[%s0 + $0x18] sm:$0xff]
  %v19 = vld [vmem:[%s0 + $0x20] sm:$0xff]
  %v20 = vld [vmem:[%s0 + $0x28] sm:$0xff]
  %v21 = vld [vmem:[%s0 + $0x30] sm:$0xff]
  %v22 = vld [vmem:[%s0 + $0x38] sm:$0xff]
  %v23 = vld [vmem:[%s0 + $0x40] sm:$0xff]
  %v24 = vld [vmem:[%s0 + $0x48] sm:$0xff]
  %v25 = vld [vmem:[%s0 + $0x50] sm:$0xff]
  %v26 = vld [vmem:[%s0 + $0x58] sm:$0xff]
  %v27 = vld [vmem:[%s0 + $0x60] sm:$0xff]
  %v28 = vld [vmem:[%s0 + $0x68] sm:$0xff]
  %v29 = vld [vmem:[%s0 + $0x70] sm:$0xff]
  %v30 = vld [vmem:[%s0 + $0x78] sm:$0xff]
  %v31 = vld [vmem:[%s1] sm:$0xf]
  %v32 = vld [vmem:[%s1 + $0x4] sm:$0xf]
  %v33 = vld [vmem:[%s1 + $0x8] sm:$0xf]
  %v34 = vld [vmem:[%s1 + $0xc] sm:$0xf]
  %v35 = vld [vmem:[%s1 + $0x10] sm:$0xf]
  %v36 = vld [vmem:[%s1 + $0x14] sm:$0xf]
  %v37 = vld [vmem:[%s1 + $0x18] sm:$0xf]
  %v38 = vld [vmem:[%s1 + $0x1c] sm:$0xf]
  %v39 = vld [vmem:[%s1 + $0x20] sm:$0xf]
  %v40 = vld [vmem:[%s1 + $0x24] sm:$0xf]
  %v41 = vld [vmem:[%s1 + $0x28] sm:$0xf]
  %v42 = vld [vmem:[%s1 + $0x2c] sm:$0xf]
  %v43 = vld [vmem:[%s1 + $0x30] sm:$0xf]
  %v44 = vld [vmem:[%s1 + $0x34] sm:$0xf]
  %v45 = vld [vmem:[%s1 + $0x38] sm:$0xf]
  %v46 = vld [vmem:[%s1 + $0x3c] sm:$0xf]
  %v47 = vld [vmem:[%s1 + $0x40] sm:$0xf]
  %v48 = vld [vmem:[%s1 + $0x44] sm:$0xf]
  %v49 = vld [vmem:[%s1 + $0x48] sm:$0xf]
  %v50 = vld [vmem:[%s1 + $0x4c] sm:$0xf]
  %v51 = vld [vmem:[%s1 + $0x50] sm:$0xf]
  %v52 = vld [vmem:[%s1 + $0x54] sm:$0xf]
  %v53 = vld [vmem:[%s1 + $0x58] sm:$0xf]
  %v54 = vld [vmem:[%s1 + $0x5c] sm:$0xf]
  %v55 = vld [vmem:[%s1 + $0x60] sm:$0xf]
  %v56 = vld [vmem:[%s1 + $0x64] sm:$0xf]
  %v57 = vld [vmem:[%s1 + $0x68] sm:$0xf]
  %v58 = vld [vmem:[%s1 + $0x6c] sm:$0xf]
  %v59 = vld [vmem:[%s1 + $0x70] sm:$0xf]
  %v60 = vld [vmem:[%s1 + $0x74] sm:$0xf]
  %v61 = vld [vmem:[%s1 + $0x78] sm:$0xf]
  %v62 = vld [vmem:[%s1 + $0x7c] sm:$0xf]
  %v63 = vld [vmem:[%s2] sm:$0x1]
  %v65 = vlaneseq
  %v66 = vshrl.u32 %v65, 7
  %v67 = vsub.s32 0, %v66
  %v68 = vrot.slane %v63, %v67
  %v86 = vunpack.c.l.b16 %v15
  %v87 = vunpack.c.h.b16 %v15
  %v88 = vunpack.c.l.b16 %v16
  %v89 = vunpack.c.h.b16 %v16
  %v90 = vunpack.c.l.b16 %v17
  %v91 = vunpack.c.h.b16 %v17
  %v92 = vunpack.c.l.b16 %v18
  %v93 = vunpack.c.h.b16 %v18
  %v94 = vunpack.c.l.b16 %v19
  %v95 = vunpack.c.h.b16 %v19
  %v96 = vunpack.c.l.b16 %v20
  %v97 = vunpack.c.h.b16 %v20
  %v98 = vunpack.c.l.b16 %v21
  %v99 = vunpack.c.h.b16 %v21
  %v100 = vunpack.c.l.b16 %v22
  %v101 = vunpack.c.h.b16 %v22
  %v102 = vunpack.c.l.b16 %v23
  %v103 = vunpack.c.h.b16 %v23
  %v104 = vunpack.c.l.b16 %v24
  %v105 = vunpack.c.h.b16 %v24
  %v106 = vunpack.c.l.b16 %v25
  %v107 = vunpack.c.h.b16 %v25
  %v108 = vunpack.c.l.b16 %v26
  %v109 = vunpack.c.h.b16 %v26
  %v110 = vunpack.c.l.b16 %v27
  %v111 = vunpack.c.h.b16 %v27
  %v112 = vunpack.c.l.b16 %v28
  %v113 = vunpack.c.h.b16 %v28
  %v114 = vunpack.c.l.b16 %v29
  %v115 = vunpack.c.h.b16 %v29
  %v116 = vunpack.c.l.b16 %v30
  %v117 = vunpack.c.h.b16 %v30
  %v118 = vpack.c.b16 %v88, %v86
  %v119 = vpack.c.b16 %v89, %v87
  %v120 = vpack.c.b16 %v92, %v90
  %v121 = vpack.c.b16 %v93, %v91
  %v122 = vpack.c.b16 %v96, %v94
  %v123 = vpack.c.b16 %v97, %v95
  %v124 = vpack.c.b16 %v100, %v98
  %v125 = vpack.c.b16 %v101, %v99
  %v126 = vpack.c.b16 %v104, %v102
  %v127 = vpack.c.b16 %v105, %v103
  %v128 = vpack.c.b16 %v108, %v106
  %v129 = vpack.c.b16 %v109, %v107
  %v130 = vpack.c.b16 %v112, %v110
  %v131 = vpack.c.b16 %v113, %v111
  %v132 = vpack.c.b16 %v116, %v114
  %v133 = vpack.c.b16 %v117, %v115
  %v182 = vunpack.c.l.b16 %v31
  %v183 = vunpack.c.l.b16 %v32
  %v184 = vunpack.c.l.b16 %v33
  %v185 = vunpack.c.l.b16 %v34
  %v186 = vunpack.c.l.b16 %v35
  %v187 = vunpack.c.l.b16 %v36
  %v188 = vunpack.c.l.b16 %v37
  %v189 = vunpack.c.l.b16 %v38
  %v190 = vunpack.c.l.b16 %v39
  %v191 = vunpack.c.l.b16 %v40
  %v192 = vunpack.c.l.b16 %v41
  %v193 = vunpack.c.l.b16 %v42
  %v194 = vunpack.c.l.b16 %v43
  %v195 = vunpack.c.l.b16 %v44
  %v196 = vunpack.c.l.b16 %v45
  %v197 = vunpack.c.l.b16 %v46
  %v198 = vunpack.c.l.b16 %v47
  %v199 = vunpack.c.l.b16 %v48
  %v200 = vunpack.c.l.b16 %v49
  %v201 = vunpack.c.l.b16 %v50
  %v202 = vunpack.c.l.b16 %v51
  %v203 = vunpack.c.l.b16 %v52
  %v204 = vunpack.c.l.b16 %v53
  %v205 = vunpack.c.l.b16 %v54
  %v206 = vunpack.c.l.b16 %v55
  %v207 = vunpack.c.l.b16 %v56
  %v208 = vunpack.c.l.b16 %v57
  %v209 = vunpack.c.l.b16 %v58
  %v210 = vunpack.c.l.b16 %v59
  %v211 = vunpack.c.l.b16 %v60
  %v212 = vunpack.c.l.b16 %v61
  %v213 = vunpack.c.l.b16 %v62
  %v214 = vpack.c.b16 %v183, %v182
  %v215 = vpack.c.b16 %v185, %v184
  %v216 = vpack.c.b16 %v187, %v186
  %v217 = vpack.c.b16 %v189, %v188
  %v218 = vpack.c.b16 %v191, %v190
  %v219 = vpack.c.b16 %v193, %v192
  %v220 = vpack.c.b16 %v195, %v194
  %v221 = vpack.c.b16 %v197, %v196
  %v222 = vpack.c.b16 %v199, %v198
  %v223 = vpack.c.b16 %v201, %v200
  %v224 = vpack.c.b16 %v203, %v202
  %v225 = vpack.c.b16 %v205, %v204
  %v226 = vpack.c.b16 %v207, %v206
  %v227 = vpack.c.b16 %v209, %v208
  %v228 = vpack.c.b16 %v211, %v210
  %v229 = vpack.c.b16 %v213, %v212
  %246 = vmatprep.subr.bf16.mxu0 0
  %247 = vmatpush1.bf16.msra.mxu0 %v221
  %248 = vmatprep.subr.bf16.mxu0 0
  %249 = vmatpush1.bf16.msra.mxu0 %v220
  %250 = vmatprep.subr.bf16.mxu0 0
  %251 = vmatpush1.bf16.msra.mxu0 %v219
  %252 = vmatprep.subr.bf16.mxu0 0
  %253 = vmatpush1.bf16.msra.mxu0 %v218
  %254 = vmatprep.subr.bf16.mxu0 0
  %255 = vmatpush1.bf16.msra.mxu0 %v217
  %256 = vmatprep.subr.bf16.mxu0 0
  %257 = vmatpush1.bf16.msra.mxu0 %v216
  %258 = vmatprep.subr.bf16.mxu0 0
  %259 = vmatpush1.bf16.msra.mxu0 %v215
  %260 = vmatprep.subr.bf16.mxu0 0
  %261 = vmatpush1.bf16.msra.mxu0 %v214
  %262 = vmatprep.subr.bf16.mxu0 0
  %263 = vmatpush2.bf16.msra.mxu0 %v229
  %264 = vmatprep.subr.bf16.mxu0 0
  %265 = vmatpush2.bf16.msra.mxu0 %v228
  %266 = vmatprep.subr.bf16.mxu0 0
  %267 = vmatpush2.bf16.msra.mxu0 %v227
  %268 = vmatprep.subr.bf16.mxu0 0
  %269 = vmatpush2.bf16.msra.mxu0 %v226
  %270 = vmatprep.subr.bf16.mxu0 0
  %271 = vmatpush2.bf16.msra.mxu0 %v225
  %272 = vmatprep.subr.bf16.mxu0 0
  %273 = vmatpush2.bf16.msra.mxu0 %v224
  %274 = vmatprep.subr.bf16.mxu0 0
  %275 = vmatpush2.bf16.msra.mxu0 %v223
  %276 = vmatprep.subr.bf16.mxu0 0
  %277 = vmatpush2.bf16.msra.mxu0 %v222
  %278 = vmatprep.mubr.bf16.mxu0 %v119
  %279 = vmatmul.mubr.bf16.gmra.mxu0 %v118
  %v280 = vpop.f32.mrf.mxu0
  %v281 = vadd.f32 %v68, %v280
  %v282 = vpop.f32.mrf.mxu0
  %v283 = vpop.f32.mrf.mxu0
  %v284 = vadd.f32 %v68, %v283
  %v285 = vpop.f32.mrf.mxu0
  %286 = vmatprep.mubr.bf16.mxu0 %v121
  %287 = vmatmul.mubr.bf16.gmra.mxu0 %v120
  %v288 = vpop.f32.mrf.mxu0
  %v289 = vadd.f32 %v68, %v288
  %v290 = vpop.f32.mrf.mxu0
  %v291 = vpop.f32.mrf.mxu0
  %v292 = vadd.f32 %v68, %v291
  %v293 = vpop.f32.mrf.mxu0
  %294 = vmatprep.mubr.bf16.mxu0 %v123
  %295 = vmatmul.mubr.bf16.gmra.mxu0 %v122
  %v296 = vpop.f32.mrf.mxu0
  %v297 = vadd.f32 %v68, %v296
  %v298 = vpop.f32.mrf.mxu0
  %v299 = vpop.f32.mrf.mxu0
  %v300 = vadd.f32 %v68, %v299
  %v301 = vpop.f32.mrf.mxu0
  %302 = vmatprep.mubr.bf16.mxu0 %v125
  %303 = vmatmul.mubr.bf16.gmra.mxu0 %v124
  %v304 = vpop.f32.mrf.mxu0
  %v305 = vadd.f32 %v68, %v304
  %v306 = vpop.f32.mrf.mxu0
  %v307 = vpop.f32.mrf.mxu0
  %v308 = vadd.f32 %v68, %v307
  %v309 = vpop.f32.mrf.mxu0
  %310 = vmatprep.mubr.bf16.mxu0 %v127
  %311 = vmatmul.mubr.bf16.gmra.mxu0 %v126
  %v312 = vpop.f32.mrf.mxu0
  %v313 = vadd.f32 %v68, %v312
  %v314 = vpop.f32.mrf.mxu0
  %v315 = vpop.f32.mrf.mxu0
  %v316 = vadd.f32 %v68, %v315
  %v317 = vpop.f32.mrf.mxu0
  %318 = vmatprep.mubr.bf16.mxu0 %v129
  %319 = vmatmul.mubr.bf16.gmra.mxu0 %v128
  %v320 = vpop.f32.mrf.mxu0
  %v321 = vadd.f32 %v68, %v320
  %v322 = vpop.f32.mrf.mxu0
  %v323 = vpop.f32.mrf.mxu0
  %v324 = vadd.f32 %v68, %v323
  %v325 = vpop.f32.mrf.mxu0
  %326 = vmatprep.mubr.bf16.mxu0 %v131
  %327 = vmatmul.mubr.bf16.gmra.mxu0 %v130
  %v328 = vpop.f32.mrf.mxu0
  %v329 = vadd.f32 %v68, %v328
  %v330 = vpop.f32.mrf.mxu0
  %v331 = vpop.f32.mrf.mxu0
  %v332 = vadd.f32 %v68, %v331
  %v333 = vpop.f32.mrf.mxu0
  %334 = vmatprep.mubr.bf16.mxu0 %v133
  %335 = vmatmul.mubr.bf16.gmra.mxu0 %v132
  %v336 = vpop.f32.mrf.mxu0
  %v337 = vadd.f32 %v68, %v336
  %v338 = vpop.f32.mrf.mxu0
  %v339 = vpop.f32.mrf.mxu0
  %v340 = vadd.f32 %v68, %v339
  %v341 = vpop.f32.mrf.mxu0
  %342 = vdwg.mxu0
  %v343 = vmax.f32 %v281, 0.0
  %v344 = vmax.f32 %v284, 0.0
  %v345 = vmax.f32 %v289, 0.0
  %v346 = vmax.f32 %v292, 0.0
  %v347 = vmax.f32 %v297, 0.0
  %v348 = vmax.f32 %v300, 0.0
  %v349 = vmax.f32 %v305, 0.0
  %v350 = vmax.f32 %v308, 0.0
  %v351 = vmax.f32 %v313, 0.0
  %v352 = vmax.f32 %v316, 0.0
  %v353 = vmax.f32 %v321, 0.0
  %v354 = vmax.f32 %v324, 0.0
  %v355 = vmax.f32 %v329, 0.0
  %v356 = vmax.f32 %v332, 0.0
  %v357 = vmax.f32 %v337, 0.0
  %v358 = vmax.f32 %v340, 0.0
  %v359 = vpack.c.bf16 %v344, %v343
  %v360 = vpack.c.bf16 %v346, %v345
  %v361 = vpack.c.bf16 %v348, %v347
  %v362 = vpack.c.bf16 %v350, %v349
  %v363 = vpack.c.bf16 %v352, %v351
  %v364 = vpack.c.bf16 %v354, %v353
  %v365 = vpack.c.bf16 %v356, %v355
  %v366 = vpack.c.bf16 %v358, %v357
  %v375 = vunpack.c.l.b16 %v359
  %v376 = vunpack.c.h.b16 %v359
  %v377 = vunpack.c.l.b16 %v360
  %v378 = vunpack.c.h.b16 %v360
  %v379 = vunpack.c.l.b16 %v361
  %v380 = vunpack.c.h.b16 %v361
  %v381 = vunpack.c.l.b16 %v362
  %v382 = vunpack.c.h.b16 %v362
  %v383 = vunpack.c.l.b16 %v363
  %v384 = vunpack.c.h.b16 %v363
  %v385 = vunpack.c.l.b16 %v364
  %v386 = vunpack.c.h.b16 %v364
  %v387 = vunpack.c.l.b16 %v365
  %v388 = vunpack.c.h.b16 %v365
  %v389 = vunpack.c.l.b16 %v366
  %v390 = vunpack.c.h.b16 %v366
  %v391 = vpack.c.b16 %v375, %v375
  %v392 = vpack.c.b16 %v376, %v376
  %v393 = vpack.c.b16 %v377, %v377
  %v394 = vpack.c.b16 %v378, %v378
  %v395 = vpack.c.b16 %v379, %v379
  %v396 = vpack.c.b16 %v380, %v380
  %v397 = vpack.c.b16 %v381, %v381
  %v398 = vpack.c.b16 %v382, %v382
  %v399 = vpack.c.b16 %v383, %v383
  %v400 = vpack.c.b16 %v384, %v384
  %v401 = vpack.c.b16 %v385, %v385
  %v402 = vpack.c.b16 %v386, %v386
  %v403 = vpack.c.b16 %v387, %v387
  %v404 = vpack.c.b16 %v388, %v388
  %v405 = vpack.c.b16 %v389, %v389
  %v406 = vpack.c.b16 %v390, %v390
  %vm423 = vcmask 257024
  %424 = vst.msk [vmem:[%s3] sm:$0xf] %vm423, %v391
  %425 = vst.msk [vmem:[%s3 + $0x4] sm:$0xf] %vm423, %v392
  %426 = vst.msk [vmem:[%s3 + $0x8] sm:$0xf] %vm423, %v393
  %427 = vst.msk [vmem:[%s3 + $0xc] sm:$0xf] %vm423, %v394
  %428 = vst.msk [vmem:[%s3 + $0x10] sm:$0xf] %vm423, %v395
  %429 = vst.msk [vmem:[%s3 + $0x14] sm:$0xf] %vm423, %v396
  %430 = vst.msk [vmem:[%s3 + $0x18] sm:$0xf] %vm423, %v397
  %431 = vst.msk [vmem:[%s3 + $0x1c] sm:$0xf] %vm423, %v398
  %432 = vst.msk [vmem:[%s3 + $0x20] sm:$0xf] %vm423, %v399
  %433 = vst.msk [vmem:[%s3 + $0x24] sm:$0xf] %vm423, %v400
  %434 = vst.msk [vmem:[%s3 + $0x28] sm:$0xf] %vm423, %v401
  %435 = vst.msk [vmem:[%s3 + $0x2c] sm:$0xf] %vm423, %v402
  %436 = vst.msk [vmem:[%s3 + $0x30] sm:$0xf] %vm423, %v403
  %437 = vst.msk [vmem:[%s3 + $0x34] sm:$0xf] %vm423, %v404
  %438 = vst.msk [vmem:[%s3 + $0x38] sm:$0xf] %vm423, %v405
  %439 = vst.msk [vmem:[%s3 + $0x3c] sm:$0xf] %vm423, %v406
  // Predicated region
  $region14: #{_forward_pair.4} parent=0 // pred_check
    _
  $region15: #{_forward_pair.4} parent=0 // pred_check_branch
    %441 = sbr.rel (0) target = $region17
  $region16: #{_forward_pair.4} parent=0 // pred_region
    _
  $region17: #{_forward_pair.4} parent=0 // pred_fallthru
    _
  // Predicated region
  $region18: #{_forward_pair.4} parent=0 // pred_check
    _
  $region19: #{_forward_pair.4} parent=0 // pred_check_branch
    %443 = sbr.rel (0) target = $region21
  $region20: #{_forward_pair.4} parent=0 // pred_region
    _
  $region21: #{_forward_pair.4} parent=0 // pred_fallthru
    _

// kernel: _forward_pair.5
$region0: #{_forward_pair.5}
  #allocation0 [shape = 'u32[]', space=smem, size = 0x4, offset = 0x4, fixed_abs, tag = 'smem constant byte address 0x4 - core index']
  #allocation1 [shape = 'u32[144,128]{1,0:T(1,128)}', space=vmem, size = 0x12000, scoped, tag = 'internal scratch']
  %s0 = inlined_call_operand.vmem [shape: bf16[18,512], index: 0, kind: input, shape index: {}]
  %s1 = inlined_call_operand.vmem [shape: bf16[512,64], index: 1, kind: input, shape index: {}]
  %s2 = inlined_call_operand.vmem [shape: f32[1,64], index: 2, kind: input, shape index: {}]
  %s3 = inlined_call_operand.vmem [shape: bf16[18,64], index: 3, kind: output, shape index: {}]
  %s4 = sld [smem:[#allocation0]]
  $region22: #{_forward_pair.5} parent=0
    _
  %s6 = ssub.s32 1, %s4
  %s7 = scalar_select 0, %s6, %s4
  // Predicated region
  $region2: #{_forward_pair.5} parent=0 // pred_check
    _
  $region3: #{_forward_pair.5} parent=0 // pred_check_branch
    %9 = sbr.rel (0) target = $region5
  $region4: #{_forward_pair.5} parent=0 // pred_region
    _
  $region5: #{_forward_pair.5} parent=0 // pred_fallthru
    _
  // Predicated region
  $region6: #{_forward_pair.5} parent=0 // pred_check
    _
  $region7: #{_forward_pair.5} parent=0 // pred_check_branch
    %11 = sbr.rel (0) target = $region9
  $region8: #{_forward_pair.5} parent=0 // pred_region
    _
  $region9: #{_forward_pair.5} parent=0 // pred_fallthru
    _
  // Predicated region
  $region10: #{_forward_pair.5} parent=0 // pred_check
    _
  $region11: #{_forward_pair.5} parent=0 // pred_check_branch
    %13 = sbr.rel (0) target = $region13
  $region12: #{_forward_pair.5} parent=0 // pred_region
    _
  $region13: #{_forward_pair.5} parent=0 // pred_fallthru
    _
  %v15 = vld [vmem:[%s0] sm:$0xff]
  %v16 = vld [vmem:[%s0 + $0x8] sm:$0xff]
  %v17 = vld [vmem:[%s0 + $0x10] sm:$0xff]
  %v18 = vld [vmem:[%s0 + $0x18] sm:$0xff]
  %v19 = vld [vmem:[%s0 + $0x20] sm:$0x11]
  %v20 = vld [vmem:[%s0 + $0x28] sm:$0x11]
  %v21 = vld [vmem:[%s1] sm:$0xf]
  %v22 = vld [vmem:[%s1 + $0x4] sm:$0xf]
  %v23 = vld [vmem:[%s1 + $0x8] sm:$0xf]
  %v24 = vld [vmem:[%s1 + $0xc] sm:$0xf]
  %v25 = vld [vmem:[%s1 + $0x10] sm:$0xf]
  %v26 = vld [vmem:[%s1 + $0x14] sm:$0xf]
  %v27 = vld [vmem:[%s1 + $0x18] sm:$0xf]
  %v28 = vld [vmem:[%s1 + $0x1c] sm:$0xf]
  %v29 = vld [vmem:[%s1 + $0x20] sm:$0xf]
  %v30 = vld [vmem:[%s1 + $0x24] sm:$0xf]
  %v31 = vld [vmem:[%s1 + $0x28] sm:$0xf]
  %v32 = vld [vmem:[%s1 + $0x2c] sm:$0xf]
  %v33 = vld [vmem:[%s1 + $0x30] sm:$0xf]
  %v34 = vld [vmem:[%s1 + $0x34] sm:$0xf]
  %v35 = vld [vmem:[%s1 + $0x38] sm:$0xf]
  %v36 = vld [vmem:[%s1 + $0x3c] sm:$0xf]
  %v37 = vld [vmem:[%s1 + $0x40] sm:$0xf]
  %v38 = vld [vmem:[%s1 + $0x44] sm:$0xf]
  %v39 = vld [vmem:[%s1 + $0x48] sm:$0xf]
  %v40 = vld [vmem:[%s1 + $0x4c] sm:$0xf]
  %v41 = vld [vmem:[%s1 + $0x50] sm:$0xf]
  %v42 = vld [vmem:[%s1 + $0x54] sm:$0xf]
  %v43 = vld [vmem:[%s1 + $0x58] sm:$0xf]
  %v44 = vld [vmem:[%s1 + $0x5c] sm:$0xf]
  %v45 = vld [vmem:[%s1 + $0x60] sm:$0xf]
  %v46 = vld [vmem:[%s1 + $0x64] sm:$0xf]
  %v47 = vld [vmem:[%s1 + $0x68] sm:$0xf]
  %v48 = vld [vmem:[%s1 + $0x6c] sm:$0xf]
  %v49 = vld [vmem:[%s1 + $0x70] sm:$0xf]
  %v50 = vld [vmem:[%s1 + $0x74] sm:$0xf]
  %v51 = vld [vmem:[%s1 + $0x78] sm:$0xf]
  %v52 = vld [vmem:[%s1 + $0x7c] sm:$0xf]
  %v53 = vld [vmem:[%s1 + $0x80] sm:$0xf]
  %v54 = vld [vmem:[%s1 + $0x84] sm:$0xf]
  %v55 = vld [vmem:[%s1 + $0x88] sm:$0xf]
  %v56 = vld [vmem:[%s1 + $0x8c] sm:$0xf]
  %v57 = vld [vmem:[%s1 + $0x90] sm:$0xf]
  %v58 = vld [vmem:[%s1 + $0x94] sm:$0xf]
  %v59 = vld [vmem:[%s1 + $0x98] sm:$0xf]
  %v60 = vld [vmem:[%s1 + $0x9c] sm:$0xf]
  %v61 = vld [vmem:[%s1 + $0xa0] sm:$0xf]
  %v62 = vld [vmem:[%s1 + $0xa4] sm:$0xf]
  %v63 = vld [vmem:[%s1 + $0xa8] sm:$0xf]
  %v64 = vld [vmem:[%s1 + $0xac] sm:$0xf]
  %v65 = vld [vmem:[%s1 + $0xb0] sm:$0xf]
  %v66 = vld [vmem:[%s1 + $0xb4] sm:$0xf]
  %v67 = vld [vmem:[%s1 + $0xb8] sm:$0xf]
  %v68 = vld [vmem:[%s1 + $0xbc] sm:$0xf]
  %v69 = vld [vmem:[%s1 + $0xc0] sm:$0xf]
  %v70 = vld [vmem:[%s1 + $0xc4] sm:$0xf]
  %v71 = vld [vmem:[%s1 + $0xc8] sm:$0xf]
  %v72 = vld [vmem:[%s1 + $0xcc] sm:$0xf]
  %v73 = vld [vmem:[%s1 + $0xd0] sm:$0xf]
  %v74 = vld [vmem:[%s1 + $0xd4] sm:$0xf]
  %v75 = vld [vmem:[%s1 + $0xd8] sm:$0xf]
  %v76 = vld [vmem:[%s1 + $0xdc] sm:$0xf]
  %v77 = vld [vmem:[%s1 + $0xe0] sm:$0xf]
  %v78 = vld [vmem:[%s1 + $0xe4] sm:$0xf]
  %v79 = vld [vmem:[%s1 + $0xe8] sm:$0xf]
  %v80 = vld [vmem:[%s1 + $0xec] sm:$0xf]
  %v81 = vld [vmem:[%s1 + $0xf0] sm:$0xf]
  %v82 = vld [vmem:[%s1 + $0xf4] sm:$0xf]
  %v83 = vld [vmem:[%s1 + $0xf8] sm:$0xf]
  %v84 = vld [vmem:[%s1 + $0xfc] sm:$0xf]
  %v85 = vld [vmem:[%s2] sm:$0x1]
  %v87 = vlaneseq
  %v88 = vshrl.u32 %v87, 7
  %v89 = vsub.s32 0, %v88
  %v90 = vrot.slane %v85, %v89
  %v98 = vunpack.c.l.b16 %v15
  %v99 = vunpack.c.h.b16 %v15
  %v100 = vunpack.c.l.b16 %v16
  %v101 = vunpack.c.h.b16 %v16
  %v102 = vunpack.c.l.b16 %v17
  %v103 = vunpack.c.h.b16 %v17
  %v104 = vunpack.c.l.b16 %v18
  %v105 = vunpack.c.h.b16 %v18
  %v106 = vunpack.c.l.b16 %v19
  %v107 = vunpack.c.h.b16 %v19
  %v108 = vunpack.c.l.b16 %v20
  %v109 = vunpack.c.h.b16 %v20
  %v110 = vpack.c.b16 %v102, %v98
  %v111 = vpack.c.b16 %v103, %v99
  %v112 = vpack.c.b16 %v104, %v100
  %v113 = vpack.c.b16 %v105, %v101
  %v114 = vpack.c.b16 %v106, %v106
  %v115 = vpack.c.b16 %v107, %v107
  %v116 = vpack.c.b16 %v108, %v108
  %v117 = vpack.c.b16 %v109, %v109
  %v190 = vunpack.c.l.b16 %v21
  %v191 = vunpack.c.l.b16 %v22
  %v192 = vunpack.c.l.b16 %v23
  %v193 = vunpack.c.l.b16 %v24
  %v194 = vunpack.c.l.b16 %v25
  %v195 = vunpack.c.l.b16 %v26
  %v196 = vunpack.c.l.b16 %v27
  %v197 = vunpack.c.l.b16 %v28
  %v198 = vunpack.c.l.b16 %v29
  %v199 = vunpack.c.l.b16 %v30
  %v200 = vunpack.c.l.b16 %v31
  %v201 = vunpack.c.l.b16 %v32
  %v202 = vunpack.c.l.b16 %v33
  %v203 = vunpack.c.l.b16 %v34
  %v204 = vunpack.c.l.b16 %v35
  %v205 = vunpack.c.l.b16 %v36
  %v206 = vunpack.c.l.b16 %v37
  %v207 = vunpack.c.l.b16 %v38
  %v208 = vunpack.c.l.b16 %v39
  %v209 = vunpack.c.l.b16 %v40
  %v210 = vunpack.c.l.b16 %v41
  %v211 = vunpack.c.l.b16 %v42
  %v212 = vunpack.c.l.b16 %v43
  %v213 = vunpack.c.l.b16 %v44
  %v214 = vunpack.c.l.b16 %v45
  %v215 = vunpack.c.l.b16 %v46
  %v216 = vunpack.c.l.b16 %v47
  %v217 = vunpack.c.l.b16 %v48
  %v218 = vunpack.c.l.b16 %v49
  %v219 = vunpack.c.l.b16 %v50
  %v220 = vunpack.c.l.b16 %v51
  %v221 = vunpack.c.l.b16 %v52
  %v222 = vunpack.c.l.b16 %v53
  %v223 = vunpack.c.l.b16 %v54
  %v224 = vunpack.c.l.b16 %v55
  %v225 = vunpack.c.l.b16 %v56
  %v226 = vunpack.c.l.b16 %v57
  %v227 = vunpack.c.l.b16 %v58
  %v228 = vunpack.c.l.b16 %v59
  %v229 = vunpack.c.l.b16 %v60
  %v230 = vunpack.c.l.b16 %v61
  %v231 = vunpack.c.l.b16 %v62
  %v232 = vunpack.c.l.b16 %v63
  %v233 = vunpack.c.l.b16 %v64
  %v234 = vunpack.c.l.b16 %v65
  %v235 = vunpack.c.l.b16 %v66
  %v236 = vunpack.c.l.b16 %v67
  %v237 = vunpack.c.l.b16 %v68
  %v238 = vunpack.c.l.b16 %v69
  %v239 = vunpack.c.l.b16 %v70
  %v240 = vunpack.c.l.b16 %v71
  %v241 = vunpack.c.l.b16 %v72
  %v242 = vunpack.c.l.b16 %v73
  %v243 = vunpack.c.l.b16 %v74
  %v244 = vunpack.c.l.b16 %v75
  %v245 = vunpack.c.l.b16 %v76
  %v246 = vunpack.c.l.b16 %v77
  %v247 = vunpack.c.l.b16 %v78
  %v248 = vunpack.c.l.b16 %v79
  %v249 = vunpack.c.l.b16 %v80
  %v250 = vunpack.c.l.b16 %v81
  %v251 = vunpack.c.l.b16 %v82
  %v252 = vunpack.c.l.b16 %v83
  %v253 = vunpack.c.l.b16 %v84
  %v254 = vpack.c.b16 %v191, %v190
  %v255 = vpack.c.b16 %v193, %v192
  %v256 = vpack.c.b16 %v195, %v194
  %v257 = vpack.c.b16 %v197, %v196
  %v258 = vpack.c.b16 %v199, %v198
  %v259 = vpack.c.b16 %v201, %v200
  %v260 = vpack.c.b16 %v203, %v202
  %v261 = vpack.c.b16 %v205, %v204
  %v262 = vpack.c.b16 %v207, %v206
  %v263 = vpack.c.b16 %v209, %v208
  %v264 = vpack.c.b16 %v211, %v210
  %v265 = vpack.c.b16 %v213, %v212
  %v266 = vpack.c.b16 %v215, %v214
  %v267 = vpack.c.b16 %v217, %v216
  %v268 = vpack.c.b16 %v219, %v218
  %v269 = vpack.c.b16 %v221, %v220
  %v270 = vpack.c.b16 %v223, %v222
  %v271 = vpack.c.b16 %v225, %v224
  %v272 = vpack.c.b16 %v227, %v226
  %v273 = vpack.c.b16 %v229, %v228
  %v274 = vpack.c.b16 %v231, %v230
  %v275 = vpack.c.b16 %v233, %v232
  %v276 = vpack.c.b16 %v235, %v234
  %v277 = vpack.c.b16 %v237, %v236
  %v278 = vpack.c.b16 %v239, %v238
  %v279 = vpack.c.b16 %v241, %v240
  %v280 = vpack.c.b16 %v243, %v242
  %v281 = vpack.c.b16 %v245, %v244
  %v282 = vpack.c.b16 %v247, %v246
  %v283 = vpack.c.b16 %v249, %v248
  %v284 = vpack.c.b16 %v251, %v250
  %v285 = vpack.c.b16 %v253, %v252
  %318 = vmatprep.subr.bf16.mxu0 0
  %319 = vmatpush1.bf16.msra.mxu0 %v261
  %320 = vmatprep.subr.bf16.mxu0 0
  %321 = vmatpush1.bf16.msra.mxu0 %v260
  %322 = vmatprep.subr.bf16.mxu0 0
  %323 = vmatpush1.bf16.msra.mxu0 %v259
  %324 = vmatprep.subr.bf16.mxu0 0
  %325 = vmatpush1.bf16.msra.mxu0 %v258
  %326 = vmatprep.subr.bf16.mxu0 0
  %327 = vmatpush1.bf16.msra.mxu0 %v257
  %328 = vmatprep.subr.bf16.mxu0 0
  %329 = vmatpush1.bf16.msra.mxu0 %v256
  %330 = vmatprep.subr.bf16.mxu0 0
  %331 = vmatpush1.bf16.msra.mxu0 %v255
  %332 = vmatprep.subr.bf16.mxu0 0
  %333 = vmatpush1.bf16.msra.mxu0 %v254
  %334 = vmatprep.subr.bf16.mxu0 0
  %335 = vmatpush2.bf16.msra.mxu0 %v269
  %336 = vmatprep.subr.bf16.mxu0 0
  %337 = vmatpush2.bf16.msra.mxu0 %v268
  %338 = vmatprep.subr.bf16.mxu0 0
  %339 = vmatpush2.bf16.msra.mxu0 %v267
  %340 = vmatprep.subr.bf16.mxu0 0
  %341 = vmatpush2.bf16.msra.mxu0 %v266
  %342 = vmatprep.subr.bf16.mxu0 0
  %343 = vmatpush2.bf16.msra.mxu0 %v265
  %344 = vmatprep.subr.bf16.mxu0 0
  %345 = vmatpush2.bf16.msra.mxu0 %v264
  %346 = vmatprep.subr.bf16.mxu0 0
  %347 = vmatpush2.bf16.msra.mxu0 %v263
  %348 = vmatprep.subr.bf16.mxu0 0
  %349 = vmatpush2.bf16.msra.mxu0 %v262
  %350 = vmatprep.mubr.bf16.mxu0 %v111
  %351 = vmatmul.mubr.bf16.gmra.mxu0 %v110
  %v352 = vpop.f32.mrf.mxu0
  %v353 = vadd.f32 %v90, %v352
  %v354 = vpop.f32.mrf.mxu0
  %v355 = vpop.f32.mrf.mxu0
  %v356 = vadd.f32 %v90, %v355
  %v357 = vpop.f32.mrf.mxu0
  %358 = vmatprep.mubr.bf16.mxu0 %v115
  %359 = vmatmul.mubr.bf16.gmra.mxu0 %v114
  %v360 = vpop.f32.mrf.mxu0
  %v361 = vadd.f32 %v90, %v360
  %v362 = vpop.f32.mrf.mxu0
  %v363 = vpop.f32.mrf.mxu0
  %v364 = vpop.f32.mrf.mxu0
  %365 = vdwg.mxu0
  %366 = vmatprep.subr.bf16.mxu0 0
  %367 = vmatpush1.bf16.msra.mxu0 %v277
  %368 = vmatprep.subr.bf16.mxu0 0
  %369 = vmatpush1.bf16.msra.mxu0 %v276
  %370 = vmatprep.subr.bf16.mxu0 0
  %371 = vmatpush1.bf16.msra.mxu0 %v275
  %372 = vmatprep.subr.bf16.mxu0 0
  %373 = vmatpush1.bf16.msra.mxu0 %v274
  %374 = vmatprep.subr.bf16.mxu0 0
  %375 = vmatpush1.bf16.msra.mxu0 %v273
  %376 = vmatprep.subr.bf16.mxu0 0
  %377 = vmatpush1.bf16.msra.mxu0 %v272
  %378 = vmatprep.subr.bf16.mxu0 0
  %379 = vmatpush1.bf16.msra.mxu0 %v271
  %380 = vmatprep.subr.bf16.mxu0 0
  %381 = vmatpush1.bf16.msra.mxu0 %v270
  %382 = vmatprep.subr.bf16.mxu0 0
  %383 = vmatpush2.bf16.msra.mxu0 %v285
  %384 = vmatprep.subr.bf16.mxu0 0
  %385 = vmatpush2.bf16.msra.mxu0 %v284
  %386 = vmatprep.subr.bf16.mxu0 0
  %387 = vmatpush2.bf16.msra.mxu0 %v283
  %388 = vmatprep.subr.bf16.mxu0 0
  %389 = vmatpush2.bf16.msra.mxu0 %v282
  %390 = vmatprep.subr.bf16.mxu0 0
  %391 = vmatpush2.bf16.msra.mxu0 %v281
  %392 = vmatprep.subr.bf16.mxu0 0
  %393 = vmatpush2.bf16.msra.mxu0 %v280
  %394 = vmatprep.subr.bf16.mxu0 0
  %395 = vmatpush2.bf16.msra.mxu0 %v279
  %396 = vmatprep.subr.bf16.mxu0 0
  %397 = vmatpush2.bf16.msra.mxu0 %v278
  %398 = vmatprep.mubr.bf16.mxu0 %v113
  %399 = vmatmul.mubr.bf16.gmra.mxu0 %v112
  %v400 = vpop.f32.mrf.mxu0
  %v401 = vadd.f32 %v353, %v400
  %v402 = vpop.f32.mrf.mxu0
  %v403 = vpop.f32.mrf.mxu0
  %v404 = vadd.f32 %v356, %v403
  %v405 = vpop.f32.mrf.mxu0
  %406 = vmatprep.mubr.bf16.mxu0 %v117
  %407 = vmatmul.mubr.bf16.gmra.mxu0 %v116
  %v408 = vpop.f32.mrf.mxu0
  %v409 = vadd.f32 %v361, %v408
  %v410 = vpop.f32.mrf.mxu0
  %v411 = vpop.f32.mrf.mxu0
  %v412 = vpop.f32.mrf.mxu0
  %413 = vdwg.mxu0
  %v414 = vmax.f32 %v401, 0.0
  %v415 = vmax.f32 %v404, 0.0
  %v416 = vmax.f32 %v409, 0.0
  %v417 = vpack.c.bf16 %v415, %v414
  %v418 = vpack.c.bf16 %v416, %v416
  %v421 = vunpack.c.l.b16 %v417
  %v422 = vunpack.c.h.b16 %v417
  %v423 = vunpack.c.l.b16 %v418
  %v424 = vpack.c.b16 %v421, %v421
  %v425 = vpack.c.b16 %v422, %v422
  %v426 = vpack.c.b16 %v423, %v423
  %vm430 = vcmask 519168
  %431 = vst.msk [vmem:[%s3] sm:$0xf] %vm430, %v424
  %432 = vst.msk [vmem:[%s3 + $0x4] sm:$0xf] %vm430, %v425
  %vm433 = vcmask 516096
  %434 = vst.msk [vmem:[%s3 + $0x8] sm:$0x1] %vm433, %v426
  // Predicated region
  $region14: #{_forward_pair.5} parent=0 // pred_check
    _
  $region15: #{_forward_pair.5} parent=0 // pred_check_branch
    %436 = sbr.rel (0) target = $region17
  $region16: #{_forward_pair.5} parent=0 // pred_region
    _
  $region17: #{_forward_pair.5} parent=0 // pred_fallthru
    _
  // Predicated region
  $region18: #{_forward_pair.5} parent=0 // pred_check
    _
  $region19: #{_forward_pair.5} parent=0 // pred_check_branch
    %438 = sbr.rel (0) target = $region21
  $region20: #{_forward_pair.5} parent=0 // pred_region
    _
  $region21: #{_forward_pair.5} parent=0 // pred_fallthru
    _

// kernel: _forward_pair.6
$region0: #{_forward_pair.6}
  #allocation0 [shape = 'u32[]', space=smem, size = 0x4, offset = 0x4, fixed_abs, tag = 'smem constant byte address 0x4 - core index']
  #allocation1 [shape = 'u32[144,128]{1,0:T(1,128)}', space=vmem, size = 0x12000, scoped, tag = 'internal scratch']
  %s0 = inlined_call_operand.vmem [shape: bf16[2,576], index: 0, kind: input, shape index: {}]
  %s1 = inlined_call_operand.vmem [shape: bf16[576,64], index: 1, kind: input, shape index: {}]
  %s2 = inlined_call_operand.vmem [shape: f32[1,64], index: 2, kind: input, shape index: {}]
  %s3 = inlined_call_operand.vmem [shape: f32[2,64], index: 3, kind: output, shape index: {}]
  %s4 = sld [smem:[#allocation0]]
  $region22: #{_forward_pair.6} parent=0
    _
  %s6 = ssub.s32 1, %s4
  %s7 = scalar_select 0, %s6, %s4
  // Predicated region
  $region2: #{_forward_pair.6} parent=0 // pred_check
    _
  $region3: #{_forward_pair.6} parent=0 // pred_check_branch
    %9 = sbr.rel (0) target = $region5
  $region4: #{_forward_pair.6} parent=0 // pred_region
    _
  $region5: #{_forward_pair.6} parent=0 // pred_fallthru
    _
  // Predicated region
  $region6: #{_forward_pair.6} parent=0 // pred_check
    _
  $region7: #{_forward_pair.6} parent=0 // pred_check_branch
    %11 = sbr.rel (0) target = $region9
  $region8: #{_forward_pair.6} parent=0 // pred_region
    _
  $region9: #{_forward_pair.6} parent=0 // pred_fallthru
    _
  // Predicated region
  $region10: #{_forward_pair.6} parent=0 // pred_check
    _
  $region11: #{_forward_pair.6} parent=0 // pred_check_branch
    %13 = sbr.rel (0) target = $region13
  $region12: #{_forward_pair.6} parent=0 // pred_region
    _
  $region13: #{_forward_pair.6} parent=0 // pred_fallthru
    _
  %v15 = vld [vmem:[%s0] sm:$0x1f]
  %v16 = vld [vmem:[%s1] sm:$0xf]
  %v17 = vld [vmem:[%s1 + $0x4] sm:$0xf]
  %v18 = vld [vmem:[%s1 + $0x8] sm:$0xf]
  %v19 = vld [vmem:[%s1 + $0xc] sm:$0xf]
  %v20 = vld [vmem:[%s1 + $0x10] sm:$0xf]
  %v21 = vld [vmem:[%s1 + $0x14] sm:$0xf]
  %v22 = vld [vmem:[%s1 + $0x18] sm:$0xf]
  %v23 = vld [vmem:[%s1 + $0x1c] sm:$0xf]
  %v24 = vld [vmem:[%s1 + $0x20] sm:$0xf]
  %v25 = vld [vmem:[%s1 + $0x24] sm:$0xf]
  %v26 = vld [vmem:[%s1 + $0x28] sm:$0xf]
  %v27 = vld [vmem:[%s1 + $0x2c] sm:$0xf]
  %v28 = vld [vmem:[%s1 + $0x30] sm:$0xf]
  %v29 = vld [vmem:[%s1 + $0x34] sm:$0xf]
  %v30 = vld [vmem:[%s1 + $0x38] sm:$0xf]
  %v31 = vld [vmem:[%s1 + $0x3c] sm:$0xf]
  %v32 = vld [vmem:[%s1 + $0x40] sm:$0xf]
  %v33 = vld [vmem:[%s1 + $0x44] sm:$0xf]
  %v34 = vld [vmem:[%s1 + $0x48] sm:$0xf]
  %v35 = vld [vmem:[%s1 + $0x4c] sm:$0xf]
  %v36 = vld [vmem:[%s1 + $0x50] sm:$0xf]
  %v37 = vld [vmem:[%s1 + $0x54] sm:$0xf]
  %v38 = vld [vmem:[%s1 + $0x58] sm:$0xf]
  %v39 = vld [vmem:[%s1 + $0x5c] sm:$0xf]
  %v40 = vld [vmem:[%s1 + $0x60] sm:$0xf]
  %v41 = vld [vmem:[%s1 + $0x64] sm:$0xf]
  %v42 = vld [vmem:[%s1 + $0x68] sm:$0xf]
  %v43 = vld [vmem:[%s1 + $0x6c] sm:$0xf]
  %v44 = vld [vmem:[%s1 + $0x70] sm:$0xf]
  %v45 = vld [vmem:[%s1 + $0x74] sm:$0xf]
  %v46 = vld [vmem:[%s1 + $0x78] sm:$0xf]
  %v47 = vld [vmem:[%s1 + $0x7c] sm:$0xf]
  %v48 = vld [vmem:[%s1 + $0x80] sm:$0xf]
  %v49 = vld [vmem:[%s1 + $0x84] sm:$0xf]
  %v50 = vld [vmem:[%s1 + $0x88] sm:$0xf]
  %v51 = vld [vmem:[%s1 + $0x8c] sm:$0xf]
  %v52 = vld [vmem:[%s1 + $0x90] sm:$0xf]
  %v53 = vld [vmem:[%s1 + $0x94] sm:$0xf]
  %v54 = vld [vmem:[%s1 + $0x98] sm:$0xf]
  %v55 = vld [vmem:[%s1 + $0x9c] sm:$0xf]
  %v56 = vld [vmem:[%s1 + $0xa0] sm:$0xf]
  %v57 = vld [vmem:[%s1 + $0xa4] sm:$0xf]
  %v58 = vld [vmem:[%s1 + $0xa8] sm:$0xf]
  %v59 = vld [vmem:[%s1 + $0xac] sm:$0xf]
  %v60 = vld [vmem:[%s1 + $0xb0] sm:$0xf]
  %v61 = vld [vmem:[%s1 + $0xb4] sm:$0xf]
  %v62 = vld [vmem:[%s1 + $0xb8] sm:$0xf]
  %v63 = vld [vmem:[%s1 + $0xbc] sm:$0xf]
  %v64 = vld [vmem:[%s1 + $0xc0] sm:$0xf]
  %v65 = vld [vmem:[%s1 + $0xc4] sm:$0xf]
  %v66 = vld [vmem:[%s1 + $0xc8] sm:$0xf]
  %v67 = vld [vmem:[%s1 + $0xcc] sm:$0xf]
  %v68 = vld [vmem:[%s1 + $0xd0] sm:$0xf]
  %v69 = vld [vmem:[%s1 + $0xd4] sm:$0xf]
  %v70 = vld [vmem:[%s1 + $0xd8] sm:$0xf]
  %v71 = vld [vmem:[%s1 + $0xdc] sm:$0xf]
  %v72 = vld [vmem:[%s1 + $0xe0] sm:$0xf]
  %v73 = vld [vmem:[%s1 + $0xe4] sm:$0xf]
  %v74 = vld [vmem:[%s1 + $0xe8] sm:$0xf]
  %v75 = vld [vmem:[%s1 + $0xec] sm:$0xf]
  %v76 = vld [vmem:[%s1 + $0xf0] sm:$0xf]
  %v77 = vld [vmem:[%s1 + $0xf4] sm:$0xf]
  %v78 = vld [vmem:[%s1 + $0xf8] sm:$0xf]
  %v79 = vld [vmem:[%s1 + $0xfc] sm:$0xf]
  %v80 = vld [vmem:[%s1 + $0x100] sm:$0xf]
  %v81 = vld [vmem:[%s1 + $0x104] sm:$0xf]
  %v82 = vld [vmem:[%s1 + $0x108] sm:$0xf]
  %v83 = vld [vmem:[%s1 + $0x10c] sm:$0xf]
  %v84 = vld [vmem:[%s1 + $0x110] sm:$0xf]
  %v85 = vld [vmem:[%s1 + $0x114] sm:$0xf]
  %v86 = vld [vmem:[%s1 + $0x118] sm:$0xf]
  %v87 = vld [vmem:[%s1 + $0x11c] sm:$0xf]
  %v88 = vld [vmem:[%s2] sm:$0x1]
  %v90 = vlaneseq
  %v91 = vshrl.u32 %v90, 7
  %v92 = vsub.s32 0, %v91
  %v93 = vrot.slane %v88, %v92
  %v96 = vcombine.high %v15, %v15
  %v98 = vunpack.c.l.s4 1966171168
  %v99 = vunpack.c.0.s8 %v98
  %v100 = vlaneseq
  %v101 = vshrl.u32 %v100, 7
  %v102 = vsub.s32 %v99, %v101
  %v103 = vrot.slane %v15, %v102
  %v105 = vunpack.c.l.s4 1966171168
  %v106 = vunpack.c.0.s8 %v105
  %v107 = vlaneseq
  %v108 = vshrl.u32 %v107, 7
  %v109 = vsub.s32 %v106, %v108
  %v110 = vrot.slane %v96, %v109
  %v111 = vcombine.high %v103, %v103
  %v113 = vunpack.c.l.s4 1966171168
  %v114 = vunpack.c.0.s8 %v113
  %v115 = vlaneseq
  %v116 = vshrl.u32 %v115, 7
  %v117 = vsub.s32 %v114, %v116
  %v118 = vrot.slane %v103, %v117
  %v120 = vunpack.c.l.s4 1966171168
  %v121 = vunpack.c.0.s8 %v120
  %v122 = vlaneseq
  %v123 = vshrl.u32 %v122, 7
  %v124 = vsub.s32 %v121, %v123
  %v125 = vrot.slane %v110, %v124
  %v127 = vunpack.c.l.s4 1966171168
  %v128 = vunpack.c.0.s8 %v127
  %v129 = vlaneseq
  %v130 = vshrl.u32 %v129, 7
  %v131 = vsub.s32 %v128, %v130
  %v132 = vrot.slane %v111, %v131
  %v133 = vcombine.high %v118, %v118
  %v134 = vcombine.high %v132, %v132
  %v211 = vunpack.c.l.b16 %v16
  %v212 = vunpack.c.l.b16 %v17
  %v213 = vunpack.c.l.b16 %v18
  %v214 = vunpack.c.l.b16 %v19
  %v215 = vunpack.c.l.b16 %v20
  %v216 = vunpack.c.l.b16 %v21
  %v217 = vunpack.c.l.b16 %v22
  %v218 = vunpack.c.l.b16 %v23
  %v219 = vunpack.c.l.b16 %v24
  %v220 = vunpack.c.l.b16 %v25
  %v221 = vunpack.c.l.b16 %v26
  %v222 = vunpack.c.l.b16 %v27
  %v223 = vunpack.c.l.b16 %v28
  %v224 = vunpack.c.l.b16 %v29
  %v225 = vunpack.c.l.b16 %v30
  %v226 = vunpack.c.l.b16 %v31
  %v227 = vunpack.c.l.b16 %v32
  %v228 = vunpack.c.l.b16 %v33
  %v229 = vunpack.c.l.b16 %v34
  %v230 = vunpack.c.l.b16 %v35
  %v231 = vunpack.c.l.b16 %v36
  %v232 = vunpack.c.l.b16 %v37
  %v233 = vunpack.c.l.b16 %v38
  %v234 = vunpack.c.l.b16 %v39
  %v235 = vunpack.c.l.b16 %v40
  %v236 = vunpack.c.l.b16 %v41
  %v237 = vunpack.c.l.b16 %v42
  %v238 = vunpack.c.l.b16 %v43
  %v239 = vunpack.c.l.b16 %v44
  %v240 = vunpack.c.l.b16 %v45
  %v241 = vunpack.c.l.b16 %v46
  %v242 = vunpack.c.l.b16 %v47
  %v243 = vunpack.c.l.b16 %v48
  %v244 = vunpack.c.l.b16 %v49
  %v245 = vunpack.c.l.b16 %v50
  %v246 = vunpack.c.l.b16 %v51
  %v247 = vunpack.c.l.b16 %v52
  %v248 = vunpack.c.l.b16 %v53
  %v249 = vunpack.c.l.b16 %v54
  %v250 = vunpack.c.l.b16 %v55
  %v251 = vunpack.c.l.b16 %v56
  %v252 = vunpack.c.l.b16 %v57
  %v253 = vunpack.c.l.b16 %v58
  %v254 = vunpack.c.l.b16 %v59
  %v255 = vunpack.c.l.b16 %v60
  %v256 = vunpack.c.l.b16 %v61
  %v257 = vunpack.c.l.b16 %v62
  %v258 = vunpack.c.l.b16 %v63
  %v259 = vunpack.c.l.b16 %v64
  %v260 = vunpack.c.l.b16 %v65
  %v261 = vunpack.c.l.b16 %v66
  %v262 = vunpack.c.l.b16 %v67
  %v263 = vunpack.c.l.b16 %v68
  %v264 = vunpack.c.l.b16 %v69
  %v265 = vunpack.c.l.b16 %v70
  %v266 = vunpack.c.l.b16 %v71
  %v267 = vunpack.c.l.b16 %v72
  %v268 = vunpack.c.l.b16 %v73
  %v269 = vunpack.c.l.b16 %v74
  %v270 = vunpack.c.l.b16 %v75
  %v271 = vunpack.c.l.b16 %v76
  %v272 = vunpack.c.l.b16 %v77
  %v273 = vunpack.c.l.b16 %v78
  %v274 = vunpack.c.l.b16 %v79
  %v275 = vunpack.c.l.b16 %v80
  %v276 = vunpack.c.l.b16 %v81
  %v277 = vunpack.c.l.b16 %v82
  %v278 = vunpack.c.l.b16 %v83
  %v279 = vunpack.c.l.b16 %v84
  %v280 = vunpack.c.l.b16 %v85
  %v281 = vunpack.c.l.b16 %v86
  %v282 = vunpack.c.l.b16 %v87
  %v283 = vpack.c.b16 %v212, %v211
  %v284 = vpack.c.b16 %v214, %v213
  %v285 = vpack.c.b16 %v216, %v215
  %v286 = vpack.c.b16 %v218, %v217
  %v287 = vpack.c.b16 %v220, %v219
  %v288 = vpack.c.b16 %v222, %v221
  %v289 = vpack.c.b16 %v224, %v223
  %v290 = vpack.c.b16 %v226, %v225
  %v291 = vpack.c.b16 %v228, %v227
  %v292 = vpack.c.b16 %v230, %v229
  %v293 = vpack.c.b16 %v232, %v231
  %v294 = vpack.c.b16 %v234, %v233
  %v295 = vpack.c.b16 %v236, %v235
  %v296 = vpack.c.b16 %v238, %v237
  %v297 = vpack.c.b16 %v240, %v239
  %v298 = vpack.c.b16 %v242, %v241
  %v299 = vpack.c.b16 %v244, %v243
  %v300 = vpack.c.b16 %v246, %v245
  %v301 = vpack.c.b16 %v248, %v247
  %v302 = vpack.c.b16 %v250, %v249
  %v303 = vpack.c.b16 %v252, %v251
  %v304 = vpack.c.b16 %v254, %v253
  %v305 = vpack.c.b16 %v256, %v255
  %v306 = vpack.c.b16 %v258, %v257
  %v307 = vpack.c.b16 %v260, %v259
  %v308 = vpack.c.b16 %v262, %v261
  %v309 = vpack.c.b16 %v264, %v263
  %v310 = vpack.c.b16 %v266, %v265
  %v311 = vpack.c.b16 %v268, %v267
  %v312 = vpack.c.b16 %v270, %v269
  %v313 = vpack.c.b16 %v272, %v271
  %v314 = vpack.c.b16 %v274, %v273
  %v315 = vpack.c.b16 %v276, %v275
  %v316 = vpack.c.b16 %v278, %v277
  %v317 = vpack.c.b16 %v280, %v279
  %v318 = vpack.c.b16 %v282, %v281
  %vm355 = vcmask 523264
  %v357 = vsel %vm355, %v125, 0
  %359 = vmatprep.subr.bf16.mxu0 0
  %360 = vmatpush1.bf16.msra.mxu0 %v290
  %361 = vmatprep.subr.bf16.mxu0 0
  %362 = vmatpush1.bf16.msra.mxu0 %v289
  %363 = vmatprep.subr.bf16.mxu0 0
  %364 = vmatpush1.bf16.msra.mxu0 %v288
  %365 = vmatprep.subr.bf16.mxu0 0
  %366 = vmatpush1.bf16.msra.mxu0 %v287
  %367 = vmatprep.subr.bf16.mxu0 0
  %368 = vmatpush1.bf16.msra.mxu0 %v286
  %369 = vmatprep.subr.bf16.mxu0 0
  %370 = vmatpush1.bf16.msra.mxu0 %v285
  %371 = vmatprep.subr.bf16.mxu0 0
  %372 = vmatpush1.bf16.msra.mxu0 %v284
  %373 = vmatprep.subr.bf16.mxu0 0
  %374 = vmatpush1.bf16.msra.mxu0 %v283
  %375 = vmatprep.subr.bf16.mxu0 0
  %376 = vmatpush2.bf16.msra.mxu0 %v298
  %377 = vmatprep.subr.bf16.mxu0 0
  %378 = vmatpush2.bf16.msra.mxu0 %v297
  %379 = vmatprep.subr.bf16.mxu0 0
  %380 = vmatpush2.bf16.msra.mxu0 %v296
  %381 = vmatprep.subr.bf16.mxu0 0
  %382 = vmatpush2.bf16.msra.mxu0 %v295
  %383 = vmatprep.subr.bf16.mxu0 0
  %384 = vmatpush2.bf16.msra.mxu0 %v294
  %385 = vmatprep.subr.bf16.mxu0 0
  %386 = vmatpush2.bf16.msra.mxu0 %v293
  %387 = vmatprep.subr.bf16.mxu0 0
  %388 = vmatpush2.bf16.msra.mxu0 %v292
  %389 = vmatprep.subr.bf16.mxu0 0
  %390 = vmatpush2.bf16.msra.mxu0 %v291
  %391 = vmatprep.mubr.bf16.mxu0 %v132
  %392 = vmatmul.mubr.bf16.gmra.mxu0 %v118
  %v393 = vpop.f32.mrf.mxu0
  %v394 = vadd.f32 %v93, %v393
  %v395 = vpop.f32.mrf.mxu0
  %v396 = vpop.f32.mrf.mxu0
  %v397 = vpop.f32.mrf.mxu0
  %398 = vdwg.mxu0
  %399 = vmatprep.subr.bf16.mxu0 0
  %400 = vmatpush1.bf16.msra.mxu0 %v306
  %401 = vmatprep.subr.bf16.mxu0 0
  %402 = vmatpush1.bf16.msra.mxu0 %v305
  %403 = vmatprep.subr.bf16.mxu0 0
  %404 = vmatpush1.bf16.msra.mxu0 %v304
  %405 = vmatprep.subr.bf16.mxu0 0
  %406 = vmatpush1.bf16.msra.mxu0 %v303
  %407 = vmatprep.subr.bf16.mxu0 0
  %408 = vmatpush1.bf16.msra.mxu0 %v302
  %409 = vmatprep.subr.bf16.mxu0 0
  %410 = vmatpush1.bf16.msra.mxu0 %v301
  %411 = vmatprep.subr.bf16.mxu0 0
  %412 = vmatpush1.bf16.msra.mxu0 %v300
  %413 = vmatprep.subr.bf16.mxu0 0
  %414 = vmatpush1.bf16.msra.mxu0 %v299
  %415 = vmatprep.subr.bf16.mxu0 0
  %416 = vmatpush2.bf16.msra.mxu0 %v314
  %417 = vmatprep.subr.bf16.mxu0 0
  %418 = vmatpush2.bf16.msra.mxu0 %v313
  %419 = vmatprep.subr.bf16.mxu0 0
  %420 = vmatpush2.bf16.msra.mxu0 %v312
  %421 = vmatprep.subr.bf16.mxu0 0
  %422 = vmatpush2.bf16.msra.mxu0 %v311
  %423 = vmatprep.subr.bf16.mxu0 0
  %424 = vmatpush2.bf16.msra.mxu0 %v310
  %425 = vmatprep.subr.bf16.mxu0 0
  %426 = vmatpush2.bf16.msra.mxu0 %v309
  %427 = vmatprep.subr.bf16.mxu0 0
  %428 = vmatpush2.bf16.msra.mxu0 %v308
  %429 = vmatprep.subr.bf16.mxu0 0
  %430 = vmatpush2.bf16.msra.mxu0 %v307
  %431 = vmatprep.mubr.bf16.mxu0 %v134
  %432 = vmatmul.mubr.bf16.gmra.mxu0 %v133
  %v433 = vpop.f32.mrf.mxu0
  %v434 = vadd.f32 %v394, %v433
  %v435 = vpop.f32.mrf.mxu0
  %v436 = vpop.f32.mrf.mxu0
  %v437 = vpop.f32.mrf.mxu0
  %438 = vdwg.mxu0
  %439 = vmatprep.subr.bf16.mxu0 0
  %440 = vmatpush1.bf16.msra.mxu0 0
  %441 = vmatprep.subr.bf16.mxu0 0
  %442 = vmatpush1.bf16.msra.mxu0 0
  %443 = vmatprep.subr.bf16.mxu0 0
  %444 = vmatpush1.bf16.msra.mxu0 0
  %445 = vmatprep.subr.bf16.mxu0 0
  %446 = vmatpush1.bf16.msra.mxu0 0
  %447 = vmatprep.subr.bf16.mxu0 0
  %448 = vmatpush1.bf16.msra.mxu0 %v318
  %449 = vmatprep.subr.bf16.mxu0 0
  %450 = vmatpush1.bf16.msra.mxu0 %v317
  %451 = vmatprep.subr.bf16.mxu0 0
  %452 = vmatpush1.bf16.msra.mxu0 %v316
  %453 = vmatprep.subr.bf16.mxu0 0
  %454 = vmatpush1.bf16.msra.mxu0 %v315
  %455 = vmatprep.subr.bf16.mxu0 0
  %456 = vmatpush2.bf16.msra.mxu0 0
  %457 = vmatprep.subr.bf16.mxu0 0
  %458 = vmatpush2.bf16.msra.mxu0 0
  %459 = vmatprep.subr.bf16.mxu0 0
  %460 = vmatpush2.bf16.msra.mxu0 0
  %461 = vmatprep.subr.bf16.mxu0 0
  %462 = vmatpush2.bf16.msra.mxu0 0
  %463 = vmatprep.subr.bf16.mxu0 0
  %464 = vmatpush2.bf16.msra.mxu0 0
  %465 = vmatprep.subr.bf16.mxu0 0
  %466 = vmatpush2.bf16.msra.mxu0 0
  %467 = vmatprep.subr.bf16.mxu0 0
  %468 = vmatpush2.bf16.msra.mxu0 0
  %469 = vmatprep.subr.bf16.mxu0 0
  %470 = vmatpush2.bf16.msra.mxu0 0
  %471 = vmatprep.mubr.bf16.mxu0 0
  %472 = vmatmul.mubr.bf16.gmra.mxu0 %v357
  %v473 = vpop.f32.mrf.mxu0
  %v474 = vadd.f32 %v434, %v473
  %v475 = vpop.f32.mrf.mxu0
  %v476 = vpop.f32.mrf.mxu0
  %v477 = vpop.f32.mrf.mxu0
  %478 = vdwg.mxu0
  %v479 = vmax.f32 %v474, 0.0
  %vm480 = vcmask 517120
  %481 = vst.msk [vmem:[%s3] sm:$0x3] %vm480, %v479
  // Predicated region
  $region14: #{_forward_pair.6} parent=0 // pred_check
    _
  $region15: #{_forward_pair.6} parent=0 // pred_check_branch
    %483 = sbr.rel (0) target = $region17
  $region16: #{_forward_pair.6} parent=0 // pred_region
    _
  $region17: #{_forward_pair.6} parent=0 // pred_fallthru
    _
  // Predicated region
  $region18: #{_forward_pair.6} parent=0 // pred_check
    _
  $region19: #{_forward_pair.6} parent=0 // pred_check_branch
    %485 = sbr.rel (0) target = $region21
  $region20: #{_forward_pair.6} parent=0 // pred_region
    _
  $region21: #{_forward_pair.6} parent=0 // pred_fallthru
    _

// kernel: _forward_pair.7
$region0: #{_forward_pair.7}
  #allocation0 [shape = 'u32[]', space=smem, size = 0x4, offset = 0x4, fixed_abs, tag = 'smem constant byte address 0x4 - core index']
  #allocation1 [shape = 'u32[144,128]{1,0:T(1,128)}', space=vmem, size = 0x12000, scoped, tag = 'internal scratch']
  %s0 = inlined_call_operand.vmem [shape: f32[2,64], index: 0, kind: input, shape index: {}]
  %s1 = inlined_call_operand.vmem [shape: f32[64,1024], index: 1, kind: input, shape index: {}]
  %s2 = inlined_call_operand.vmem [shape: f32[1,1024], index: 2, kind: input, shape index: {}]
  %s3 = inlined_call_operand.vmem [shape: f32[1024,128], index: 3, kind: input, shape index: {}]
  %s4 = inlined_call_operand.vmem [shape: f32[1,128], index: 4, kind: input, shape index: {}]
  %s5 = inlined_call_operand.vmem [shape: f32[1,8], index: 5, kind: input, shape index: {}]
  %s6 = inlined_call_operand.vmem [shape: f32[2,32], index: 6, kind: output, shape index: {0}]
  %s7 = inlined_call_operand.hbm [shape: f32[2,4], index: 7, kind: output, shape index: {1}]
  %8 = xla_tuple %s6, %s7
  %s9 = sld [smem:[#allocation0]]
  $region42: #{_forward_pair.7} parent=0
    _
  %s11 = ssub.s32 1, %s9
  %s12 = scalar_select 0, %s11, %s9
  $region1: #{_forward_pair.7} parent=0
    #allocation2 [shape = 'u8[1024]{0}', space=vmem, size = 0x400, scoped, tag = 'output window, operand 1, single buffered']
    #allocation3 [shape = 's32[1]{0}', space=sflag, size = 0x4, scoped, tag = 'scoped memory for _forward_pair.7']
    %13 = vsyncpa [#allocation3], 0
    // Predicated region
    $region2: #{_forward_pair.7} parent=1 // pred_check
      _
    $region3: #{_forward_pair.7} parent=1 // pred_check_branch
      %15 = sbr.rel (0) target = $region5
    $region4: #{_forward_pair.7} parent=1 // pred_region
      _
    $region5: #{_forward_pair.7} parent=1 // pred_fallthru
      _
    // Predicated region
    $region6: #{_forward_pair.7} parent=1 // pred_check
      _
    $region7: #{_forward_pair.7} parent=1 // pred_check_branch
      %17 = sbr.rel (0) target = $region9
    $region8: #{_forward_pair.7} parent=1 // pred_region
      _
    $region9: #{_forward_pair.7} parent=1 // pred_fallthru
      _
    // Predicated region
    $region10: #{_forward_pair.7} parent=1 // pred_check
      _
    $region11: #{_forward_pair.7} parent=1 // pred_check_branch
      %19 = sbr.rel (0) target = $region13
    $region12: #{_forward_pair.7} parent=1 // pred_region
      _
    $region13: #{_forward_pair.7} parent=1 // pred_fallthru
      _
    // Predicated region
    $region14: #{_forward_pair.7} parent=1 // pred_check
      _
    $region15: #{_forward_pair.7} parent=1 // pred_check_branch
      %21 = sbr.rel (0) target = $region17
    $region16: #{_forward_pair.7} parent=1 // pred_region
      _
    $region17: #{_forward_pair.7} parent=1 // pred_fallthru
      _
    // Predicated region
    $region18: #{_forward_pair.7} parent=1 // pred_check
      _
    $region19: #{_forward_pair.7} parent=1 // pred_check_branch
      %23 = sbr.rel (0) target = $region21
    $region20: #{_forward_pair.7} parent=1 // pred_region
      _
    $region21: #{_forward_pair.7} parent=1 // pred_fallthru
      _
    // Predicated region
    $region22: #{_forward_pair.7} parent=1 // pred_check
      _
    $region23: #{_forward_pair.7} parent=1 // pred_check_branch
      %25 = sbr.rel (0) target = $region25
    $region24: #{_forward_pair.7} parent=1 // pred_region
      _
    $region25: #{_forward_pair.7} parent=1 // pred_fallthru
      _
    %v26 = vld [vmem:[%s0] sm:$0x3]
    %v27 = vld [vmem:[%s1] sm:$0xff]
    %v28 = vld [vmem:[%s1 + $0x8] sm:$0xff]
    %v29 = vld [vmem:[%s1 + $0x10] sm:$0xff]
    %v30 = vld [vmem:[%s1 + $0x18] sm:$0xff]
    %v31 = vld [vmem:[%s1 + $0x20] sm:$0xff]
    %v32 = vld [vmem:[%s1 + $0x28] sm:$0xff]
    %v33 = vld [vmem:[%s1 + $0x30] sm:$0xff]
    %v34 = vld [vmem:[%s1 + $0x38] sm:$0xff]
    %v35 = vld [vmem:[%s1 + $0x40] sm:$0xff]
    %v36 = vld [vmem:[%s1 + $0x48] sm:$0xff]
    %v37 = vld [vmem:[%s1 + $0x50] sm:$0xff]
    %v38 = vld [vmem:[%s1 + $0x58] sm:$0xff]
    %v39 = vld [vmem:[%s1 + $0x60] sm:$0xff]
    %v40 = vld [vmem:[%s1 + $0x68] sm:$0xff]
    %v41 = vld [vmem:[%s1 + $0x70] sm:$0xff]
    %v42 = vld [vmem:[%s1 + $0x78] sm:$0xff]
    %v43 = vld [vmem:[%s1 + $0x80] sm:$0xff]
    %v44 = vld [vmem:[%s1 + $0x88] sm:$0xff]
    %v45 = vld [vmem:[%s1 + $0x90] sm:$0xff]
    %v46 = vld [vmem:[%s1 + $0x98] sm:$0xff]
    %v47 = vld [vmem:[%s1 + $0xa0] sm:$0xff]
    %v48 = vld [vmem:[%s1 + $0xa8] sm:$0xff]
    %v49 = vld [vmem:[%s1 + $0xb0] sm:$0xff]
    %v50 = vld [vmem:[%s1 + $0xb8] sm:$0xff]
    %v51 = vld [vmem:[%s1 + $0xc0] sm:$0xff]
    %v52 = vld [vmem:[%s1 + $0xc8] sm:$0xff]
    %v53 = vld [vmem:[%s1 + $0xd0] sm:$0xff]
    %v54 = vld [vmem:[%s1 + $0xd8] sm:$0xff]
    %v55 = vld [vmem:[%s1 + $0xe0] sm:$0xff]
    %v56 = vld [vmem:[%s1 + $0xe8] sm:$0xff]
    %v57 = vld [vmem:[%s1 + $0xf0] sm:$0xff]
    %v58 = vld [vmem:[%s1 + $0xf8] sm:$0xff]
    %v59 = vld [vmem:[%s1 + $0x100] sm:$0xff]
    %v60 = vld [vmem:[%s1 + $0x108] sm:$0xff]
    %v61 = vld [vmem:[%s1 + $0x110] sm:$0xff]
    %v62 = vld [vmem:[%s1 + $0x118] sm:$0xff]
    %v63 = vld [vmem:[%s1 + $0x120] sm:$0xff]
    %v64 = vld [vmem:[%s1 + $0x128] sm:$0xff]
    %v65 = vld [vmem:[%s1 + $0x130] sm:$0xff]
    %v66 = vld [vmem:[%s1 + $0x138] sm:$0xff]
    %v67 = vld [vmem:[%s1 + $0x140] sm:$0xff]
    %v68 = vld [vmem:[%s1 + $0x148] sm:$0xff]
    %v69 = vld [vmem:[%s1 + $0x150] sm:$0xff]
    %v70 = vld [vmem:[%s1 + $0x158] sm:$0xff]
    %v71 = vld [vmem:[%s1 + $0x160] sm:$0xff]
    %v72 = vld [vmem:[%s1 + $0x168] sm:$0xff]
    %v73 = vld [vmem:[%s1 + $0x170] sm:$0xff]
    %v74 = vld [vmem:[%s1 + $0x178] sm:$0xff]
    %v75 = vld [vmem:[%s1 + $0x180] sm:$0xff]
    %v76 = vld [vmem:[%s1 + $0x188] sm:$0xff]
    %v77 = vld [vmem:[%s1 + $0x190] sm:$0xff]
    %v78 = vld [vmem:[%s1 + $0x198] sm:$0xff]
    %v79 = vld [vmem:[%s1 + $0x1a0] sm:$0xff]
    %v80 = vld [vmem:[%s1 + $0x1a8] sm:$0xff]
    %v81 = vld [vmem:[%s1 + $0x1b0] sm:$0xff]
    %v82 = vld [vmem:[%s1 + $0x1b8] sm:$0xff]
    %v83 = vld [vmem:[%s1 + $0x1c0] sm:$0xff]
    %v84 = vld [vmem:[%s1 + $0x1c8] sm:$0xff]
    %v85 = vld [vmem:[%s1 + $0x1d0] sm:$0xff]
    %v86 = vld [vmem:[%s1 + $0x1d8] sm:$0xff]
    %v87 = vld [vmem:[%s1 + $0x1e0] sm:$0xff]
    %v88 = vld [vmem:[%s1 + $0x1e8] sm:$0xff]
    %v89 = vld [vmem:[%s1 + $0x1f0] sm:$0xff]
    %v90 = vld [vmem:[%s1 + $0x1f8] sm:$0xff]
    %v91 = vld [vmem:[%s2] sm:$0xff]
    %v93 = vlaneseq
    %v94 = vshrl.u32 %v93, 7
    %v95 = vsub.s32 0, %v94
    %v96 = vrot.slane %v91, %v95
    %v97 = vlaneseq
    %v98 = vshrl.u32 %v97, 7
    %v99 = vsub.s32 1, %v98
    %v100 = vrot.slane %v91, %v99
    %v101 = vlaneseq
    %v102 = vshrl.u32 %v101, 7
    %v103 = vsub.s32 2, %v102
    %v104 = vrot.slane %v91, %v103
    %v105 = vlaneseq
    %v106 = vshrl.u32 %v105, 7
    %v107 = vsub.s32 3, %v106
    %v108 = vrot.slane %v91, %v107
    %v109 = vlaneseq
    %v110 = vshrl.u32 %v109, 7
    %v111 = vsub.s32 4, %v110
    %v112 = vrot.slane %v91, %v111
    %v113 = vlaneseq
    %v114 = vshrl.u32 %v113, 7
    %v115 = vsub.s32 5, %v114
    %v116 = vrot.slane %v91, %v115
    %v117 = vlaneseq
    %v118 = vshrl.u32 %v117, 7
    %v119 = vsub.s32 6, %v118
    %v120 = vrot.slane %v91, %v119
    %v121 = vlaneseq
    %v122 = vshrl.u32 %v121, 7
    %v123 = vsub.s32 7, %v122
    %v124 = vrot.slane %v91, %v123
    %vm133 = vcmask 523264
    %v135 = vsel %vm133, %v26, 0
    %137 = vmatprep.subr.mxu0 0.0
    %138 = vmatpush1.msra.mxu0 0.0
    %139 = vmatprep.subr.mxu0 0.0
    %140 = vmatpush1.msra.mxu0 0.0
    %141 = vmatprep.subr.mxu0 0.0
    %142 = vmatpush1.msra.mxu0 0.0
    %143 = vmatprep.subr.mxu0 0.0
    %144 = vmatpush1.msra.mxu0 0.0
    %145 = vmatprep.subr.mxu0 0.0
    %146 = vmatpush1.msra.mxu0 0.0
    %147 = vmatprep.subr.mxu0 0.0
    %148 = vmatpush1.msra.mxu0 0.0
    %149 = vmatprep.subr.mxu0 0.0
    %150 = vmatpush1.msra.mxu0 0.0
    %151 = vmatprep.subr.mxu0 0.0
    %152 = vmatpush1.msra.mxu0 0.0
    %153 = vmatprep.subr.mxu0 %v84
    %154 = vmatpush1.msra.mxu0 %v83
    %155 = vmatprep.subr.mxu0 %v76
    %156 = vmatpush1.msra.mxu0 %v75
    %157 = vmatprep.subr.mxu0 %v68
    %158 = vmatpush1.msra.mxu0 %v67
    %159 = vmatprep.subr.mxu0 %v60
    %160 = vmatpush1.msra.mxu0 %v59
    %161 = vmatprep.subr.mxu0 %v52
    %162 = vmatpush1.msra.mxu0 %v51
    %163 = vmatprep.subr.mxu0 %v44
    %164 = vmatpush1.msra.mxu0 %v43
    %165 = vmatprep.subr.mxu0 %v36
    %166 = vmatpush1.msra.mxu0 %v35
    %167 = vmatprep.subr.mxu0 %v28
    %168 = vmatpush1.msra.mxu0 %v27
    %169 = vmatprep.subr.mxu0 0.0
    %170 = vmatpush2.msra.mxu0 0.0
    %171 = vmatprep.subr.mxu0 0.0
    %172 = vmatpush2.msra.mxu0 0.0
    %173 = vmatprep.subr.mxu0 0.0
    %174 = vmatpush2.msra.mxu0 0.0
    %175 = vmatprep.subr.mxu0 0.0
    %176 = vmatpush2.msra.mxu0 0.0
    %177 = vmatprep.subr.mxu0 0.0
    %178 = vmatpush2.msra.mxu0 0.0
    %179 = vmatprep.subr.mxu0 0.0
    %180 = vmatpush2.msra.mxu0 0.0
    %181 = vmatprep.subr.mxu0 0.0
    %182 = vmatpush2.msra.mxu0 0.0
    %183 = vmatprep.subr.mxu0 0.0
    %184 = vmatpush2.msra.mxu0 0.0
    %185 = vmatprep.subr.mxu0 0.0
    %186 = vmatpush2.msra.mxu0 0.0
    %187 = vmatprep.subr.mxu0 0.0
    %188 = vmatpush2.msra.mxu0 0.0
    %189 = vmatprep.subr.mxu0 0.0
    %190 = vmatpush2.msra.mxu0 0.0
    %191 = vmatprep.subr.mxu0 0.0
    %192 = vmatpush2.msra.mxu0 0.0
    %193 = vmatprep.subr.mxu0 0.0
    %194 = vmatpush2.msra.mxu0 0.0
    %195 = vmatprep.subr.mxu0 0.0
    %196 = vmatpush2.msra.mxu0 0.0
    %197 = vmatprep.subr.mxu0 0.0
    %198 = vmatpush2.msra.mxu0 0.0
    %199 = vmatprep.subr.mxu0 0.0
    %200 = vmatpush2.msra.mxu0 0.0
    %201 = vmatprep.mubr.f32.mxu0 0.0
    %202 = vmatmul.mubr.f32.gmra.mxu0 %v135
    %v203 = vpop.f32.mrf.mxu0
    %v204 = vadd.f32 %v96, %v203
    %v205 = vpop.f32.mrf.mxu0
    %v206 = vadd.f32 %v100, %v205
    %207 = vdwg.mxu0
    %208 = vmatprep.subr.mxu0 0.0
    %209 = vmatpush1.msra.mxu0 0.0
    %210 = vmatprep.subr.mxu0 0.0
    %211 = vmatpush1.msra.mxu0 0.0
    %212 = vmatprep.subr.mxu0 0.0
    %213 = vmatpush1.msra.mxu0 0.0
    %214 = vmatprep.subr.mxu0 0.0
    %215 = vmatpush1.msra.mxu0 0.0
    %216 = vmatprep.subr.mxu0 0.0
    %217 = vmatpush1.msra.mxu0 0.0
    %218 = vmatprep.subr.mxu0 0.0
    %219 = vmatpush1.msra.mxu0 0.0
    %220 = vmatprep.subr.mxu0 0.0
    %221 = vmatpush1.msra.mxu0 0.0
    %222 = vmatprep.subr.mxu0 0.0
    %223 = vmatpush1.msra.mxu0 0.0
    %224 = vmatprep.subr.mxu0 %v86
    %225 = vmatpush1.msra.mxu0 %v85
    %226 = vmatprep.subr.mxu0 %v78
    %227 = vmatpush1.msra.mxu0 %v77
    %228 = vmatprep.subr.mxu0 %v70
    %229 = vmatpush1.msra.mxu0 %v69
    %230 = vmatprep.subr.mxu0 %v62
    %231 = vmatpush1.msra.mxu0 %v61
    %232 = vmatprep.subr.mxu0 %v54
    %233 = vmatpush1.msra.mxu0 %v53
    %234 = vmatprep.subr.mxu0 %v46
    %235 = vmatpush1.msra.mxu0 %v45
    %236 = vmatprep.subr.mxu0 %v38
    %237 = vmatpush1.msra.mxu0 %v37
    %238 = vmatprep.subr.mxu0 %v30
    %239 = vmatpush1.msra.mxu0 %v29
    %240 = vmatprep.subr.mxu0 0.0
    %241 = vmatpush2.msra.mxu0 0.0
    %242 = vmatprep.subr.mxu0 0.0
    %243 = vmatpush2.msra.mxu0 0.0
    %244 = vmatprep.subr.mxu0 0.0
    %245 = vmatpush2.msra.mxu0 0.0
    %246 = vmatprep.subr.mxu0 0.0
    %247 = vmatpush2.msra.mxu0 0.0
    %248 = vmatprep.subr.mxu0 0.0
    %249 = vmatpush2.msra.mxu0 0.0
    %250 = vmatprep.subr.mxu0 0.0
    %251 = vmatpush2.msra.mxu0 0.0
    %252 = vmatprep.subr.mxu0 0.0
    %253 = vmatpush2.msra.mxu0 0.0
    %254 = vmatprep.subr.mxu0 0.0
    %255 = vmatpush2.msra.mxu0 0.0
    %256 = vmatprep.subr.mxu0 0.0
    %257 = vmatpush2.msra.mxu0 0.0
    %258 = vmatprep.subr.mxu0 0.0
    %259 = vmatpush2.msra.mxu0 0.0
    %260 = vmatprep.subr.mxu0 0.0
    %261 = vmatpush2.msra.mxu0 0.0
    %262 = vmatprep.subr.mxu0 0.0
    %263 = vmatpush2.msra.mxu0 0.0
    %264 = vmatprep.subr.mxu0 0.0
    %265 = vmatpush2.msra.mxu0 0.0
    %266 = vmatprep.subr.mxu0 0.0
    %267 = vmatpush2.msra.mxu0 0.0
    %268 = vmatprep.subr.mxu0 0.0
    %269 = vmatpush2.msra.mxu0 0.0
    %270 = vmatprep.subr.mxu0 0.0
    %271 = vmatpush2.msra.mxu0 0.0
    %272 = vmatprep.mubr.f32.mxu0 0.0
    %273 = vmatmul.mubr.f32.gmra.mxu0 %v135
    %v274 = vpop.f32.mrf.mxu0
    %v275 = vadd.f32 %v104, %v274
    %v276 = vpop.f32.mrf.mxu0
    %v277 = vadd.f32 %v108, %v276
    %278 = vdwg.mxu0
    %279 = vmatprep.subr.mxu0 0.0
    %280 = vmatpush1.msra.mxu0 0.0
    %281 = vmatprep.subr.mxu0 0.0
    %282 = vmatpush1.msra.mxu0 0.0
    %283 = vmatprep.subr.mxu0 0.0
    %284 = vmatpush1.msra.mxu0 0.0
    %285 = vmatprep.subr.mxu0 0.0
    %286 = vmatpush1.msra.mxu0 0.0
    %287 = vmatprep.subr.mxu0 0.0
    %288 = vmatpush1.msra.mxu0 0.0
    %289 = vmatprep.subr.mxu0 0.0
    %290 = vmatpush1.msra.mxu0 0.0
    %291 = vmatprep.subr.mxu0 0.0
    %292 = vmatpush1.msra.mxu0 0.0
    %293 = vmatprep.subr.mxu0 0.0
    %294 = vmatpush1.msra.mxu0 0.0
    %295 = vmatprep.subr.mxu0 %v88
    %296 = vmatpush1.msra.mxu0 %v87
    %297 = vmatprep.subr.mxu0 %v80
    %298 = vmatpush1.msra.mxu0 %v79
    %299 = vmatprep.subr.mxu0 %v72
    %300 = vmatpush1.msra.mxu0 %v71
    %301 = vmatprep.subr.mxu0 %v64
    %302 = vmatpush1.msra.mxu0 %v63
    %303 = vmatprep.subr.mxu0 %v56
    %304 = vmatpush1.msra.mxu0 %v55
    %305 = vmatprep.subr.mxu0 %v48
    %306 = vmatpush1.msra.mxu0 %v47
    %307 = vmatprep.subr.mxu0 %v40
    %308 = vmatpush1.msra.mxu0 %v39
    %309 = vmatprep.subr.mxu0 %v32
    %310 = vmatpush1.msra.mxu0 %v31
    %311 = vmatprep.subr.mxu0 0.0
    %312 = vmatpush2.msra.mxu0 0.0
    %313 = vmatprep.subr.mxu0 0.0
    %314 = vmatpush2.msra.mxu0 0.0
    %315 = vmatprep.subr.mxu0 0.0
    %316 = vmatpush2.msra.mxu0 0.0
    %317 = vmatprep.subr.mxu0 0.0
    %318 = vmatpush2.msra.mxu0 0.0
    %319 = vmatprep.subr.mxu0 0.0
    %320 = vmatpush2.msra.mxu0 0.0
    %321 = vmatprep.subr.mxu0 0.0
    %322 = vmatpush2.msra.mxu0 0.0
    %323 = vmatprep.subr.mxu0 0.0
    %324 = vmatpush2.msra.mxu0 0.0
    %325 = vmatprep.subr.mxu0 0.0
    %326 = vmatpush2.msra.mxu0 0.0
    %327 = vmatprep.subr.mxu0 0.0
    %328 = vmatpush2.msra.mxu0 0.0
    %329 = vmatprep.subr.mxu0 0.0
    %330 = vmatpush2.msra.mxu0 0.0
    %331 = vmatprep.subr.mxu0 0.0
    %332 = vmatpush2.msra.mxu0 0.0
    %333 = vmatprep.subr.mxu0 0.0
    %334 = vmatpush2.msra.mxu0 0.0
    %335 = vmatprep.subr.mxu0 0.0
    %336 = vmatpush2.msra.mxu0 0.0
    %337 = vmatprep.subr.mxu0 0.0
    %338 = vmatpush2.msra.mxu0 0.0
    %339 = vmatprep.subr.mxu0 0.0
    %340 = vmatpush2.msra.mxu0 0.0
    %341 = vmatprep.subr.mxu0 0.0
    %342 = vmatpush2.msra.mxu0 0.0
    %343 = vmatprep.mubr.f32.mxu0 0.0
    %344 = vmatmul.mubr.f32.gmra.mxu0 %v135
    %v345 = vpop.f32.mrf.mxu0
    %v346 = vadd.f32 %v112, %v345
    %v347 = vpop.f32.mrf.mxu0
    %v348 = vadd.f32 %v116, %v347
    %349 = vdwg.mxu0
    %350 = vmatprep.subr.mxu0 0.0
    %351 = vmatpush1.msra.mxu0 0.0
    %352 = vmatprep.subr.mxu0 0.0
    %353 = vmatpush1.msra.mxu0 0.0
    %354 = vmatprep.subr.mxu0 0.0
    %355 = vmatpush1.msra.mxu0 0.0
    %356 = vmatprep.subr.mxu0 0.0
    %357 = vmatpush1.msra.mxu0 0.0
    %358 = vmatprep.subr.mxu0 0.0
    %359 = vmatpush1.msra.mxu0 0.0
    %360 = vmatprep.subr.mxu0 0.0
    %361 = vmatpush1.msra.mxu0 0.0
    %362 = vmatprep.subr.mxu0 0.0
    %363 = vmatpush1.msra.mxu0 0.0
    %364 = vmatprep.subr.mxu0 0.0
    %365 = vmatpush1.msra.mxu0 0.0
    %366 = vmatprep.subr.mxu0 %v90
    %367 = vmatpush1.msra.mxu0 %v89
    %368 = vmatprep.subr.mxu0 %v82
    %369 = vmatpush1.msra.mxu0 %v81
    %370 = vmatprep.subr.mxu0 %v74
    %371 = vmatpush1.msra.mxu0 %v73
    %372 = vmatprep.subr.mxu0 %v66
    %373 = vmatpush1.msra.mxu0 %v65
    %374 = vmatprep.subr.mxu0 %v58
    %375 = vmatpush1.msra.mxu0 %v57
    %376 = vmatprep.subr.mxu0 %v50
    %377 = vmatpush1.msra.mxu0 %v49
    %378 = vmatprep.subr.mxu0 %v42
    %379 = vmatpush1.msra.mxu0 %v41
    %380 = vmatprep.subr.mxu0 %v34
    %381 = vmatpush1.msra.mxu0 %v33
    %382 = vmatprep.subr.mxu0 0.0
    %383 = vmatpush2.msra.mxu0 0.0
    %384 = vmatprep.subr.mxu0 0.0
    %385 = vmatpush2.msra.mxu0 0.0
    %386 = vmatprep.subr.mxu0 0.0
    %387 = vmatpush2.msra.mxu0 0.0
    %388 = vmatprep.subr.mxu0 0.0
    %389 = vmatpush2.msra.mxu0 0.0
    %390 = vmatprep.subr.mxu0 0.0
    %391 = vmatpush2.msra.mxu0 0.0
    %392 = vmatprep.subr.mxu0 0.0
    %393 = vmatpush2.msra.mxu0 0.0
    %394 = vmatprep.subr.mxu0 0.0
    %395 = vmatpush2.msra.mxu0 0.0
    %396 = vmatprep.subr.mxu0 0.0
    %397 = vmatpush2.msra.mxu0 0.0
    %398 = vmatprep.subr.mxu0 0.0
    %399 = vmatpush2.msra.mxu0 0.0
    %400 = vmatprep.subr.mxu0 0.0
    %401 = vmatpush2.msra.mxu0 0.0
    %402 = vmatprep.subr.mxu0 0.0
    %403 = vmatpush2.msra.mxu0 0.0
    %404 = vmatprep.subr.mxu0 0.0
    %405 = vmatpush2.msra.mxu0 0.0
    %406 = vmatprep.subr.mxu0 0.0
    %407 = vmatpush2.msra.mxu0 0.0
    %408 = vmatprep.subr.mxu0 0.0
    %409 = vmatpush2.msra.mxu0 0.0
    %410 = vmatprep.subr.mxu0 0.0
    %411 = vmatpush2.msra.mxu0 0.0
    %412 = vmatprep.subr.mxu0 0.0
    %413 = vmatpush2.msra.mxu0 0.0
    %414 = vmatprep.mubr.f32.mxu0 0.0
    %415 = vmatmul.mubr.f32.gmra.mxu0 %v135
    %v416 = vpop.f32.mrf.mxu0
    %v417 = vadd.f32 %v120, %v416
    %v418 = vpop.f32.mrf.mxu0
    %v419 = vadd.f32 %v124, %v418
    %420 = vdwg.mxu0
    %v421 = vmax.f32 %v204, 0.0
    %v422 = vmax.f32 %v206, 0.0
    %v423 = vmax.f32 %v275, 0.0
    %v424 = vmax.f32 %v277, 0.0
    %v425 = vmax.f32 %v346, 0.0
    %v426 = vmax.f32 %v348, 0.0
    %v427 = vmax.f32 %v417, 0.0
    %v428 = vmax.f32 %v419, 0.0
    %v429 = vld [vmem:[%s3] sm:$0xff]
    %v430 = vld [vmem:[%s3 + $0x8] sm:$0xff]
    %v431 = vld [vmem:[%s3 + $0x10] sm:$0xff]
    %v432 = vld [vmem:[%s3 + $0x18] sm:$0xff]
    %v433 = vld [vmem:[%s3 + $0x20] sm:$0xff]
    %v434 = vld [vmem:[%s3 + $0x28] sm:$0xff]
    %v435 = vld [vmem:[%s3 + $0x30] sm:$0xff]
    %v436 = vld [vmem:[%s3 + $0x38] sm:$0xff]
    %v437 = vld [vmem:[%s3 + $0x40] sm:$0xff]
    %v438 = vld [vmem:[%s3 + $0x48] sm:$0xff]
    %v439 = vld [vmem:[%s3 + $0x50] sm:$0xff]
    %v440 = vld [vmem:[%s3 + $0x58] sm:$0xff]
    %v441 = vld [vmem:[%s3 + $0x60] sm:$0xff]
    %v442 = vld [vmem:[%s3 + $0x68] sm:$0xff]
    %v443 = vld [vmem:[%s3 + $0x70] sm:$0xff]
    %v444 = vld [vmem:[%s3 + $0x78] sm:$0xff]
    %v445 = vld [vmem:[%s3 + $0x80] sm:$0xff]
    %v446 = vld [vmem:[%s3 + $0x88] sm:$0xff]
    %v447 = vld [vmem:[%s3 + $0x90] sm:$0xff]
    %v448 = vld [vmem:[%s3 + $0x98] sm:$0xff]
    %v449 = vld [vmem:[%s3 + $0xa0] sm:$0xff]
    %v450 = vld [vmem:[%s3 + $0xa8] sm:$0xff]
    %v451 = vld [vmem:[%s3 + $0xb0] sm:$0xff]
    %v452 = vld [vmem:[%s3 + $0xb8] sm:$0xff]
    %v453 = vld [vmem:[%s3 + $0xc0] sm:$0xff]
    %v454 = vld [vmem:[%s3 + $0xc8] sm:$0xff]
    %v455 = vld [vmem:[%s3 + $0xd0] sm:$0xff]
    %v456 = vld [vmem:[%s3 + $0xd8] sm:$0xff]
    %v457 = vld [vmem:[%s3 + $0xe0] sm:$0xff]
    %v458 = vld [vmem:[%s3 + $0xe8] sm:$0xff]
    %v459 = vld [vmem:[%s3 + $0xf0] sm:$0xff]
    %v460 = vld [vmem:[%s3 + $0xf8] sm:$0xff]
    %v461 = vld [vmem:[%s3 + $0x100] sm:$0xff]
    %v462 = vld [vmem:[%s3 + $0x108] sm:$0xff]
    %v463 = vld [vmem:[%s3 + $0x110] sm:$0xff]
    %v464 = vld [vmem:[%s3 + $0x118] sm:$0xff]
    %v465 = vld [vmem:[%s3 + $0x120] sm:$0xff]
    %v466 = vld [vmem:[%s3 + $0x128] sm:$0xff]
    %v467 = vld [vmem:[%s3 + $0x130] sm:$0xff]
    %v468 = vld [vmem:[%s3 + $0x138] sm:$0xff]
    %v469 = vld [vmem:[%s3 + $0x140] sm:$0xff]
    %v470 = vld [vmem:[%s3 + $0x148] sm:$0xff]
    %v471 = vld [vmem:[%s3 + $0x150] sm:$0xff]
    %v472 = vld [vmem:[%s3 + $0x158] sm:$0xff]
    %v473 = vld [vmem:[%s3 + $0x160] sm:$0xff]
    %v474 = vld [vmem:[%s3 + $0x168] sm:$0xff]
    %v475 = vld [vmem:[%s3 + $0x170] sm:$0xff]
    %v476 = vld [vmem:[%s3 + $0x178] sm:$0xff]
    %v477 = vld [vmem:[%s3 + $0x180] sm:$0xff]
    %v478 = vld [vmem:[%s3 + $0x188] sm:$0xff]
    %v479 = vld [vmem:[%s3 + $0x190] sm:$0xff]
    %v480 = vld [vmem:[%s3 + $0x198] sm:$0xff]
    %v481 = vld [vmem:[%s3 + $0x1a0] sm:$0xff]
    %v482 = vld [vmem:[%s3 + $0x1a8] sm:$0xff]
    %v483 = vld [vmem:[%s3 + $0x1b0] sm:$0xff]
    %v484 = vld [vmem:[%s3 + $0x1b8] sm:$0xff]
    %v485 = vld [vmem:[%s3 + $0x1c0] sm:$0xff]
    %v486 = vld [vmem:[%s3 + $0x1c8] sm:$0xff]
    %v487 = vld [vmem:[%s3 + $0x1d0] sm:$0xff]
    %v488 = vld [vmem:[%s3 + $0x1d8] sm:$0xff]
    %v489 = vld [vmem:[%s3 + $0x1e0] sm:$0xff]
    %v490 = vld [vmem:[%s3 + $0x1e8] sm:$0xff]
    %v491 = vld [vmem:[%s3 + $0x1f0] sm:$0xff]
    %v492 = vld [vmem:[%s3 + $0x1f8] sm:$0xff]
    %v493 = vld [vmem:[%s3 + $0x200] sm:$0xff]
    %v494 = vld [vmem:[%s3 + $0x208] sm:$0xff]
    %v495 = vld [vmem:[%s3 + $0x210] sm:$0xff]
    %v496 = vld [vmem:[%s3 + $0x218] sm:$0xff]
    %v497 = vld [vmem:[%s3 + $0x220] sm:$0xff]
    %v498 = vld [vmem:[%s3 + $0x228] sm:$0xff]
    %v499 = vld [vmem:[%s3 + $0x230] sm:$0xff]
    %v500 = vld [vmem:[%s3 + $0x238] sm:$0xff]
    %v501 = vld [vmem:[%s3 + $0x240] sm:$0xff]
    %v502 = vld [vmem:[%s3 + $0x248] sm:$0xff]
    %v503 = vld [vmem:[%s3 + $0x250] sm:$0xff]
    %v504 = vld [vmem:[%s3 + $0x258] sm:$0xff]
    %v505 = vld [vmem:[%s3 + $0x260] sm:$0xff]
    %v506 = vld [vmem:[%s3 + $0x268] sm:$0xff]
    %v507 = vld [vmem:[%s3 + $0x270] sm:$0xff]
    %v508 = vld [vmem:[%s3 + $0x278] sm:$0xff]
    %v509 = vld [vmem:[%s3 + $0x280] sm:$0xff]
    %v510 = vld [vmem:[%s3 + $0x288] sm:$0xff]
    %v511 = vld [vmem:[%s3 + $0x290] sm:$0xff]
    %v512 = vld [vmem:[%s3 + $0x298] sm:$0xff]
    %v513 = vld [vmem:[%s3 + $0x2a0] sm:$0xff]
    %v514 = vld [vmem:[%s3 + $0x2a8] sm:$0xff]
    %v515 = vld [vmem:[%s3 + $0x2b0] sm:$0xff]
    %v516 = vld [vmem:[%s3 + $0x2b8] sm:$0xff]
    %v517 = vld [vmem:[%s3 + $0x2c0] sm:$0xff]
    %v518 = vld [vmem:[%s3 + $0x2c8] sm:$0xff]
    %v519 = vld [vmem:[%s3 + $0x2d0] sm:$0xff]
    %v520 = vld [vmem:[%s3 + $0x2d8] sm:$0xff]
    %v521 = vld [vmem:[%s3 + $0x2e0] sm:$0xff]
    %v522 = vld [vmem:[%s3 + $0x2e8] sm:$0xff]
    %v523 = vld [vmem:[%s3 + $0x2f0] sm:$0xff]
    %v524 = vld [vmem:[%s3 + $0x2f8] sm:$0xff]
    %v525 = vld [vmem:[%s3 + $0x300] sm:$0xff]
    %v526 = vld [vmem:[%s3 + $0x308] sm:$0xff]
    %v527 = vld [vmem:[%s3 + $0x310] sm:$0xff]
    %v528 = vld [vmem:[%s3 + $0x318] sm:$0xff]
    %v529 = vld [vmem:[%s3 + $0x320] sm:$0xff]
    %v530 = vld [vmem:[%s3 + $0x328] sm:$0xff]
    %v531 = vld [vmem:[%s3 + $0x330] sm:$0xff]
    %v532 = vld [vmem:[%s3 + $0x338] sm:$0xff]
    %v533 = vld [vmem:[%s3 + $0x340] sm:$0xff]
    %v534 = vld [vmem:[%s3 + $0x348] sm:$0xff]
    %v535 = vld [vmem:[%s3 + $0x350] sm:$0xff]
    %v536 = vld [vmem:[%s3 + $0x358] sm:$0xff]
    %v537 = vld [vmem:[%s3 + $0x360] sm:$0xff]
    %v538 = vld [vmem:[%s3 + $0x368] sm:$0xff]
    %v539 = vld [vmem:[%s3 + $0x370] sm:$0xff]
    %v540 = vld [vmem:[%s3 + $0x378] sm:$0xff]
    %v541 = vld [vmem:[%s3 + $0x380] sm:$0xff]
    %v542 = vld [vmem:[%s3 + $0x388] sm:$0xff]
    %v543 = vld [vmem:[%s3 + $0x390] sm:$0xff]
    %v544 = vld [vmem:[%s3 + $0x398] sm:$0xff]
    %v545 = vld [vmem:[%s3 + $0x3a0] sm:$0xff]
    %v546 = vld [vmem:[%s3 + $0x3a8] sm:$0xff]
    %v547 = vld [vmem:[%s3 + $0x3b0] sm:$0xff]
    %v548 = vld [vmem:[%s3 + $0x3b8] sm:$0xff]
    %v549 = vld [vmem:[%s3 + $0x3c0] sm:$0xff]
    %v550 = vld [vmem:[%s3 + $0x3c8] sm:$0xff]
    %v551 = vld [vmem:[%s3 + $0x3d0] sm:$0xff]
    %v552 = vld [vmem:[%s3 + $0x3d8] sm:$0xff]
    %v553 = vld [vmem:[%s3 + $0x3e0] sm:$0xff]
    %v554 = vld [vmem:[%s3 + $0x3e8] sm:$0xff]
    %v555 = vld [vmem:[%s3 + $0x3f0] sm:$0xff]
    %v556 = vld [vmem:[%s3 + $0x3f8] sm:$0xff]
    %v557 = vld [vmem:[%s4] sm:$0x1]
    %v559 = vlaneseq
    %v560 = vshrl.u32 %v559, 7
    %v561 = vsub.s32 0, %v560
    %v562 = vrot.slane %v557, %v561
    %564 = vmatprep.subr.mxu0 0.0
    %565 = vmatpush1.msra.mxu0 %v444
    %566 = vmatprep.subr.mxu0 0.0
    %567 = vmatpush1.msra.mxu0 %v443
    %568 = vmatprep.subr.mxu0 0.0
    %569 = vmatpush1.msra.mxu0 %v442
    %570 = vmatprep.subr.mxu0 0.0
    %571 = vmatpush1.msra.mxu0 %v441
    %572 = vmatprep.subr.mxu0 0.0
    %573 = vmatpush1.msra.mxu0 %v440
    %574 = vmatprep.subr.mxu0 0.0
    %575 = vmatpush1.msra.mxu0 %v439
    %576 = vmatprep.subr.mxu0 0.0
    %577 = vmatpush1.msra.mxu0 %v438
    %578 = vmatprep.subr.mxu0 0.0
    %579 = vmatpush1.msra.mxu0 %v437
    %580 = vmatprep.subr.mxu0 0.0
    %581 = vmatpush1.msra.mxu0 %v436
    %582 = vmatprep.subr.mxu0 0.0
    %583 = vmatpush1.msra.mxu0 %v435
    %584 = vmatprep.subr.mxu0 0.0
    %585 = vmatpush1.msra.mxu0 %v434
    %586 = vmatprep.subr.mxu0 0.0
    %587 = vmatpush1.msra.mxu0 %v433
    %588 = vmatprep.subr.mxu0 0.0
    %589 = vmatpush1.msra.mxu0 %v432
    %590 = vmatprep.subr.mxu0 0.0
    %591 = vmatpush1.msra.mxu0 %v431
    %592 = vmatprep.subr.mxu0 0.0
    %593 = vmatpush1.msra.mxu0 %v430
    %594 = vmatprep.subr.mxu0 0.0
    %595 = vmatpush1.msra.mxu0 %v429
    %596 = vmatprep.subr.mxu0 0.0
    %597 = vmatpush2.msra.mxu0 %v460
    %598 = vmatprep.subr.mxu0 0.0
    %599 = vmatpush2.msra.mxu0 %v459
    %600 = vmatprep.subr.mxu0 0.0
    %601 = vmatpush2.msra.mxu0 %v458
    %602 = vmatprep.subr.mxu0 0.0
    %603 = vmatpush2.msra.mxu0 %v457
    %604 = vmatprep.subr.mxu0 0.0
    %605 = vmatpush2.msra.mxu0 %v456
    %606 = vmatprep.subr.mxu0 0.0
    %607 = vmatpush2.msra.mxu0 %v455
    %608 = vmatprep.subr.mxu0 0.0
    %609 = vmatpush2.msra.mxu0 %v454
    %610 = vmatprep.subr.mxu0 0.0
    %611 = vmatpush2.msra.mxu0 %v453
    %612 = vmatprep.subr.mxu0 0.0
    %613 = vmatpush2.msra.mxu0 %v452
    %614 = vmatprep.subr.mxu0 0.0
    %615 = vmatpush2.msra.mxu0 %v451
    %616 = vmatprep.subr.mxu0 0.0
    %617 = vmatpush2.msra.mxu0 %v450
    %618 = vmatprep.subr.mxu0 0.0
    %619 = vmatpush2.msra.mxu0 %v449
    %620 = vmatprep.subr.mxu0 0.0
    %621 = vmatpush2.msra.mxu0 %v448
    %622 = vmatprep.subr.mxu0 0.0
    %623 = vmatpush2.msra.mxu0 %v447
    %624 = vmatprep.subr.mxu0 0.0
    %625 = vmatpush2.msra.mxu0 %v446
    %626 = vmatprep.subr.mxu0 0.0
    %627 = vmatpush2.msra.mxu0 %v445
    %628 = vmatprep.mubr.f32.mxu0 %v422
    %629 = vmatmul.mubr.f32.gmra.mxu0 %v421
    %v630 = vpop.f32.mrf.mxu0
    %v631 = vadd.f32 %v562, %v630
    %v632 = vpop.f32.mrf.mxu0
    %633 = vdwg.mxu0
    %634 = vmatprep.subr.mxu0 0.0
    %635 = vmatpush1.msra.mxu0 %v476
    %636 = vmatprep.subr.mxu0 0.0
    %637 = vmatpush1.msra.mxu0 %v475
    %638 = vmatprep.subr.mxu0 0.0
    %639 = vmatpush1.msra.mxu0 %v474
    %640 = vmatprep.subr.mxu0 0.0
    %641 = vmatpush1.msra.mxu0 %v473
    %642 = vmatprep.subr.mxu0 0.0
    %643 = vmatpush1.msra.mxu0 %v472
    %644 = vmatprep.subr.mxu0 0.0
    %645 = vmatpush1.msra.mxu0 %v471
    %646 = vmatprep.subr.mxu0 0.0
    %647 = vmatpush1.msra.mxu0 %v470
    %648 = vmatprep.subr.mxu0 0.0
    %649 = vmatpush1.msra.mxu0 %v469
    %650 = vmatprep.subr.mxu0 0.0
    %651 = vmatpush1.msra.mxu0 %v468
    %652 = vmatprep.subr.mxu0 0.0
    %653 = vmatpush1.msra.mxu0 %v467
    %654 = vmatprep.subr.mxu0 0.0
    %655 = vmatpush1.msra.mxu0 %v466
    %656 = vmatprep.subr.mxu0 0.0
    %657 = vmatpush1.msra.mxu0 %v465
    %658 = vmatprep.subr.mxu0 0.0
    %659 = vmatpush1.msra.mxu0 %v464
    %660 = vmatprep.subr.mxu0 0.0
    %661 = vmatpush1.msra.mxu0 %v463
    %662 = vmatprep.subr.mxu0 0.0
    %663 = vmatpush1.msra.mxu0 %v462
    %664 = vmatprep.subr.mxu0 0.0
    %665 = vmatpush1.msra.mxu0 %v461
    %666 = vmatprep.subr.mxu0 0.0
    %667 = vmatpush2.msra.mxu0 %v492
    %668 = vmatprep.subr.mxu0 0.0
    %669 = vmatpush2.msra.mxu0 %v491
    %670 = vmatprep.subr.mxu0 0.0
    %671 = vmatpush2.msra.mxu0 %v490
    %672 = vmatprep.subr.mxu0 0.0
    %673 = vmatpush2.msra.mxu0 %v489
    %674 = vmatprep.subr.mxu0 0.0
    %675 = vmatpush2.msra.mxu0 %v488
    %676 = vmatprep.subr.mxu0 0.0
    %677 = vmatpush2.msra.mxu0 %v487
    %678 = vmatprep.subr.mxu0 0.0
    %679 = vmatpush2.msra.mxu0 %v486
    %680 = vmatprep.subr.mxu0 0.0
    %681 = vmatpush2.msra.mxu0 %v485
    %682 = vmatprep.subr.mxu0 0.0
    %683 = vmatpush2.msra.mxu0 %v484
    %684 = vmatprep.subr.mxu0 0.0
    %685 = vmatpush2.msra.mxu0 %v483
    %686 = vmatprep.subr.mxu0 0.0
    %687 = vmatpush2.msra.mxu0 %v482
    %688 = vmatprep.subr.mxu0 0.0
    %689 = vmatpush2.msra.mxu0 %v481
    %690 = vmatprep.subr.mxu0 0.0
    %691 = vmatpush2.msra.mxu0 %v480
    %692 = vmatprep.subr.mxu0 0.0
    %693 = vmatpush2.msra.mxu0 %v479
    %694 = vmatprep.subr.mxu0 0.0
    %695 = vmatpush2.msra.mxu0 %v478
    %696 = vmatprep.subr.mxu0 0.0
    %697 = vmatpush2.msra.mxu0 %v477
    %698 = vmatprep.mubr.f32.mxu0 %v424
    %699 = vmatmul.mubr.f32.gmra.mxu0 %v423
    %v700 = vpop.f32.mrf.mxu0
    %v701 = vadd.f32 %v631, %v700
    %v702 = vpop.f32.mrf.mxu0
    %703 = vdwg.mxu0
    %704 = vmatprep.subr.mxu0 0.0
    %705 = vmatpush1.msra.mxu0 %v508
    %706 = vmatprep.subr.mxu0 0.0
    %707 = vmatpush1.msra.mxu0 %v507
    %708 = vmatprep.subr.mxu0 0.0
    %709 = vmatpush1.msra.mxu0 %v506
    %710 = vmatprep.subr.mxu0 0.0
    %711 = vmatpush1.msra.mxu0 %v505
    %712 = vmatprep.subr.mxu0 0.0
    %713 = vmatpush1.msra.mxu0 %v504
    %714 = vmatprep.subr.mxu0 0.0
    %715 = vmatpush1.msra.mxu0 %v503
    %716 = vmatprep.subr.mxu0 0.0
    %717 = vmatpush1.msra.mxu0 %v502
    %718 = vmatprep.subr.mxu0 0.0
    %719 = vmatpush1.msra.mxu0 %v501
    %720 = vmatprep.subr.mxu0 0.0
    %721 = vmatpush1.msra.mxu0 %v500
    %722 = vmatprep.subr.mxu0 0.0
    %723 = vmatpush1.msra.mxu0 %v499
    %724 = vmatprep.subr.mxu0 0.0
    %725 = vmatpush1.msra.mxu0 %v498
    %726 = vmatprep.subr.mxu0 0.0
    %727 = vmatpush1.msra.mxu0 %v497
    %728 = vmatprep.subr.mxu0 0.0
    %729 = vmatpush1.msra.mxu0 %v496
    %730 = vmatprep.subr.mxu0 0.0
    %731 = vmatpush1.msra.mxu0 %v495
    %732 = vmatprep.subr.mxu0 0.0
    %733 = vmatpush1.msra.mxu0 %v494
    %734 = vmatprep.subr.mxu0 0.0
    %735 = vmatpush1.msra.mxu0 %v493
    %736 = vmatprep.subr.mxu0 0.0
    %737 = vmatpush2.msra.mxu0 %v524
    %738 = vmatprep.subr.mxu0 0.0
    %739 = vmatpush2.msra.mxu0 %v523
    %740 = vmatprep.subr.mxu0 0.0
    %741 = vmatpush2.msra.mxu0 %v522
    %742 = vmatprep.subr.mxu0 0.0
    %743 = vmatpush2.msra.mxu0 %v521
    %744 = vmatprep.subr.mxu0 0.0
    %745 = vmatpush2.msra.mxu0 %v520
    %746 = vmatprep.subr.mxu0 0.0
    %747 = vmatpush2.msra.mxu0 %v519
    %748 = vmatprep.subr.mxu0 0.0
    %749 = vmatpush2.msra.mxu0 %v518
    %750 = vmatprep.subr.mxu0 0.0
    %751 = vmatpush2.msra.mxu0 %v517
    %752 = vmatprep.subr.mxu0 0.0
    %753 = vmatpush2.msra.mxu0 %v516
    %754 = vmatprep.subr.mxu0 0.0
    %755 = vmatpush2.msra.mxu0 %v515
    %756 = vmatprep.subr.mxu0 0.0
    %757 = vmatpush2.msra.mxu0 %v514
    %758 = vmatprep.subr.mxu0 0.0
    %759 = vmatpush2.msra.mxu0 %v513
    %760 = vmatprep.subr.mxu0 0.0
    %761 = vmatpush2.msra.mxu0 %v512
    %762 = vmatprep.subr.mxu0 0.0
    %763 = vmatpush2.msra.mxu0 %v511
    %764 = vmatprep.subr.mxu0 0.0
    %765 = vmatpush2.msra.mxu0 %v510
    %766 = vmatprep.subr.mxu0 0.0
    %767 = vmatpush2.msra.mxu0 %v509
    %768 = vmatprep.mubr.f32.mxu0 %v426
    %769 = vmatmul.mubr.f32.gmra.mxu0 %v425
    %v770 = vpop.f32.mrf.mxu0
    %v771 = vadd.f32 %v701, %v770
    %v772 = vpop.f32.mrf.mxu0
    %773 = vdwg.mxu0
    %774 = vmatprep.subr.mxu0 0.0
    %775 = vmatpush1.msra.mxu0 %v540
    %776 = vmatprep.subr.mxu0 0.0
    %777 = vmatpush1.msra.mxu0 %v539
    %778 = vmatprep.subr.mxu0 0.0
    %779 = vmatpush1.msra.mxu0 %v538
    %780 = vmatprep.subr.mxu0 0.0
    %781 = vmatpush1.msra.mxu0 %v537
    %782 = vmatprep.subr.mxu0 0.0
    %783 = vmatpush1.msra.mxu0 %v536
    %784 = vmatprep.subr.mxu0 0.0
    %785 = vmatpush1.msra.mxu0 %v535
    %786 = vmatprep.subr.mxu0 0.0
    %787 = vmatpush1.msra.mxu0 %v534
    %788 = vmatprep.subr.mxu0 0.0
    %789 = vmatpush1.msra.mxu0 %v533
    %790 = vmatprep.subr.mxu0 0.0
    %791 = vmatpush1.msra.mxu0 %v532
    %792 = vmatprep.subr.mxu0 0.0
    %793 = vmatpush1.msra.mxu0 %v531
    %794 = vmatprep.subr.mxu0 0.0
    %795 = vmatpush1.msra.mxu0 %v530
    %796 = vmatprep.subr.mxu0 0.0
    %797 = vmatpush1.msra.mxu0 %v529
    %798 = vmatprep.subr.mxu0 0.0
    %799 = vmatpush1.msra.mxu0 %v528
    %800 = vmatprep.subr.mxu0 0.0
    %801 = vmatpush1.msra.mxu0 %v527
    %802 = vmatprep.subr.mxu0 0.0
    %803 = vmatpush1.msra.mxu0 %v526
    %804 = vmatprep.subr.mxu0 0.0
    %805 = vmatpush1.msra.mxu0 %v525
    %806 = vmatprep.subr.mxu0 0.0
    %807 = vmatpush2.msra.mxu0 %v556
    %808 = vmatprep.subr.mxu0 0.0
    %809 = vmatpush2.msra.mxu0 %v555
    %810 = vmatprep.subr.mxu0 0.0
    %811 = vmatpush2.msra.mxu0 %v554
    %812 = vmatprep.subr.mxu0 0.0
    %813 = vmatpush2.msra.mxu0 %v553
    %814 = vmatprep.subr.mxu0 0.0
    %815 = vmatpush2.msra.mxu0 %v552
    %816 = vmatprep.subr.mxu0 0.0
    %817 = vmatpush2.msra.mxu0 %v551
    %818 = vmatprep.subr.mxu0 0.0
    %819 = vmatpush2.msra.mxu0 %v550
    %820 = vmatprep.subr.mxu0 0.0
    %821 = vmatpush2.msra.mxu0 %v549
    %822 = vmatprep.subr.mxu0 0.0
    %823 = vmatpush2.msra.mxu0 %v548
    %824 = vmatprep.subr.mxu0 0.0
    %825 = vmatpush2.msra.mxu0 %v547
    %826 = vmatprep.subr.mxu0 0.0
    %827 = vmatpush2.msra.mxu0 %v546
    %828 = vmatprep.subr.mxu0 0.0
    %829 = vmatpush2.msra.mxu0 %v545
    %830 = vmatprep.subr.mxu0 0.0
    %831 = vmatpush2.msra.mxu0 %v544
    %832 = vmatprep.subr.mxu0 0.0
    %833 = vmatpush2.msra.mxu0 %v543
    %834 = vmatprep.subr.mxu0 0.0
    %835 = vmatpush2.msra.mxu0 %v542
    %836 = vmatprep.subr.mxu0 0.0
    %837 = vmatpush2.msra.mxu0 %v541
    %838 = vmatprep.mubr.f32.mxu0 %v428
    %839 = vmatmul.mubr.f32.gmra.mxu0 %v427
    %v840 = vpop.f32.mrf.mxu0
    %v841 = vadd.f32 %v771, %v840
    %v842 = vpop.f32.mrf.mxu0
    %843 = vdwg.mxu0
    %845 = vrot.lane.b32.xlu0 %v841, 120
    %v846 = vpop.permute.xlu0 %845
    %v848 = vadd.f32 %v841, %v846
    %849 = vrot.lane.b32.xlu0 %v841, 112
    %v850 = vpop.permute.xlu0 %849
    %v852 = vadd.f32 %v848, %v850
    %853 = vrot.lane.b32.xlu0 %v841, 104
    %v854 = vpop.permute.xlu0 %853
    %v856 = vadd.f32 %v852, %v854
    %v857 = vmul.f32 %v856, 0.25
    %v858 = vld [vmem:[%s5] sm:$0x1]
    %v860 = vlaneseq
    %v861 = vshrl.u32 %v860, 7
    %v862 = vsub.s32 0, %v861
    %v863 = vrot.slane %v858, %v862
    %864 = vrot.lane.b32.xlu0 %v841, 32
    %v865 = vpop.permute.xlu0 %864
    %v867 = vadd.f32 %v841, %v865
    %869 = vrot.lane.b32.xlu0 %v857, 32
    %v870 = vpop.permute.xlu0 %869
    %v872 = vsub.f32 %v867, %v870
    %vm873 = vcmask 320768
    %v874 = vsel %vm873, %v872, -inf
    %875 = vmax.xlane.f32.xlu0 %v874
    %v876 = vpop.xlane.xlu0 %875
    %v877 = vsub.f32 %v872, %v876
    %v878 = vmul.f32 %v877, 1.442695
    %v879 = vpow.pop %v878
    %881 = vrot.lane.b32.xlu0 %v879, 96
    %v882 = vpop.permute.xlu0 %881
    %vm884 = vcmask 58368
    %v885 = vsel %vm884, %v882, 0.0
    %886 = vadd.xlane.f32.xlu0 %v885
    %v887 = vpop.xlane.xlu0 %886
    %v888 = vrcp.pop %v887
    %v889 = vmul.f32 %v879, %v888
    %v890 = vmax.f32 %v889, 0.001
    %891 = vrot.lane.b32.xlu0 %v863, 32
    %v892 = vpop.permute.xlu0 %891
    %v894 = vmul.f32 %v890, %v892
    %896 = vrot.lane.b32.xlu0 %v894, 96
    %v897 = vpop.permute.xlu0 %896
    %v899 = vsel %vm884, %v897, 0.0
    %900 = vadd.xlane.f32.xlu0 %v899
    %v901 = vpop.xlane.xlu0 %900
    %902 = vrot.lane.b32.xlu0 %v841, 24
    %v903 = vpop.permute.xlu0 %902
    %v905 = vadd.f32 %v841, %v903
    %v906 = vsub.f32 %v905, %v870
    %v907 = vsel %vm873, %v906, -inf
    %908 = vmax.xlane.f32.xlu0 %v907
    %v909 = vpop.xlane.xlu0 %908
    %v910 = vsub.f32 %v906, %v909
    %v911 = vmul.f32 %v910, 1.442695
    %v912 = vpow.pop %v911
    %914 = vrot.lane.b32.xlu0 %v912, 96
    %v915 = vpop.permute.xlu0 %914
    %v917 = vsel %vm884, %v915, 0.0
    %918 = vadd.xlane.f32.xlu0 %v917
    %v919 = vpop.xlane.xlu0 %918
    %v920 = vrcp.pop %v919
    %v921 = vmul.f32 %v912, %v920
    %v922 = vmax.f32 %v921, 0.001
    %v923 = vmul.f32 %v922, %v892
    %925 = vrot.lane.b32.xlu0 %v923, 96
    %v926 = vpop.permute.xlu0 %925
    %v928 = vsel %vm884, %v926, 0.0
    %929 = vadd.xlane.f32.xlu0 %v928
    %v930 = vpop.xlane.xlu0 %929
    %931 = vrot.lane.b32.xlu0 %v841, 16
    %v932 = vpop.permute.xlu0 %931
    %v934 = vadd.f32 %v841, %v932
    %v935 = vsub.f32 %v934, %v870
    %v936 = vsel %vm873, %v935, -inf
    %937 = vmax.xlane.f32.xlu0 %v936
    %v938 = vpop.xlane.xlu0 %937
    %v939 = vsub.f32 %v935, %v938
    %v940 = vmul.f32 %v939, 1.442695
    %v941 = vpow.pop %v940
    %943 = vrot.lane.b32.xlu0 %v941, 96
    %v944 = vpop.permute.xlu0 %943
    %v946 = vsel %vm884, %v944, 0.0
    %947 = vadd.xlane.f32.xlu0 %v946
    %v948 = vpop.xlane.xlu0 %947
    %v949 = vrcp.pop %v948
    %v950 = vmul.f32 %v941, %v949
    %v951 = vmax.f32 %v950, 0.001
    %v952 = vmul.f32 %v951, %v892
    %954 = vrot.lane.b32.xlu0 %v952, 96
    %v955 = vpop.permute.xlu0 %954
    %v957 = vsel %vm884, %v955, 0.0
    %958 = vadd.xlane.f32.xlu0 %v957
    %v959 = vpop.xlane.xlu0 %958
    %960 = vrot.lane.b32.xlu0 %v841, 8
    %v961 = vpop.permute.xlu0 %960
    %v963 = vadd.f32 %v841, %v961
    %v964 = vsub.f32 %v963, %v870
    %v965 = vsel %vm873, %v964, -inf
    %966 = vmax.xlane.f32.xlu0 %v965
    %v967 = vpop.xlane.xlu0 %966
    %v968 = vsub.f32 %v964, %v967
    %v969 = vmul.f32 %v968, 1.442695
    %v970 = vpow.pop %v969
    %972 = vrot.lane.b32.xlu0 %v970, 96
    %v973 = vpop.permute.xlu0 %972
    %v975 = vsel %vm884, %v973, 0.0
    %976 = vadd.xlane.f32.xlu0 %v975
    %v977 = vpop.xlane.xlu0 %976
    %v978 = vrcp.pop %v977
    %v979 = vmul.f32 %v970, %v978
    %v980 = vmax.f32 %v979, 0.001
    %v981 = vmul.f32 %v980, %v892
    %983 = vrot.lane.b32.xlu0 %v981, 96
    %v984 = vpop.permute.xlu0 %983
    %v986 = vsel %vm884, %v984, 0.0
    %987 = vadd.xlane.f32.xlu0 %v986
    %v988 = vpop.xlane.xlu0 %987
    %990 = vrot.lane.b32.xlu0 %v890, 96
    %v991 = vpop.permute.xlu0 %990
    %994 = vrot.lane.b32.xlu0 %v922, 104
    %v995 = vpop.permute.xlu0 %994
    %998 = vrot.lane.b32.xlu0 %v951, 112
    %v999 = vpop.permute.xlu0 %998
    %1002 = vrot.lane.b32.xlu0 %v980, 120
    %v1003 = vpop.permute.xlu0 %1002
    %vm1005 = vcmask 64512
    %v1006 = vsel %vm1005, %v991, %v995
    %vm1007 = vcmask 130048
    %v1008 = vsel %vm1007, %v1006, %v999
    %vm1009 = vcmask 195584
    %v1010 = vsel %vm1009, %v1008, %v1003
    %vm1011 = vcmask 254976
    %1012 = vst.msk [vmem:[%s6] sm:$0x3] %vm1011, %v1010
    %vm1013 = vcmask 7168
    %v1014 = vsel %vm1013, %v901, %v930
    %vm1015 = vcmask 15360
    %v1016 = vsel %vm1015, %v1014, %v959
    %vm1017 = vcmask 23552
    %v1018 = vsel %vm1017, %v1016, %v988
    %vm1019 = vcmask 25600
    %1020 = vst.msk [vmem:[#allocation2] sm:$0x3] %vm1019, %v1018
    // Predicated region
    $region26: #{_forward_pair.7} parent=1 // pred_check
      _
    $region27: #{_forward_pair.7} parent=1 // pred_check_branch
      %1022 = sbr.rel (0) target = $region29
    $region28: #{_forward_pair.7} parent=1 // pred_region
      _
    $region29: #{_forward_pair.7} parent=1 // pred_fallthru
      _
    // Predicated region
    $region30: #{_forward_pair.7} parent=1 // pred_check
      _
    $region31: #{_forward_pair.7} parent=1 // pred_check_branch
      %1024 = sbr.rel (0) target = $region33
    $region32: #{_forward_pair.7} parent=1 // pred_region
      %s1026 = ssub.s32 32, 32
      %1027 = vsyncadd [#allocation3], %s1026
      %s1029 = sshll.u32 [#allocation2], 4
      %s1030 = int_to_ptr.vmem [resolvable:$true] %s1029
      %1032 = dma.vmem_to_hbm [thread:$0]  %s1030, 32, %s7, [#allocation3]
    $region33: #{_forward_pair.7} parent=1 // pred_fallthru
      _
    // Predicated region
    $region34: #{_forward_pair.7} parent=1 // pred_check
      _
    $region35: #{_forward_pair.7} parent=1 // pred_check_branch
      %1034 = sbr.rel (0) target = $region37
    $region36: #{_forward_pair.7} parent=1 // pred_region
      _
    $region37: #{_forward_pair.7} parent=1 // pred_fallthru
      _
    // Predicated region
    $region38: #{_forward_pair.7} parent=1 // pred_check
      _
    $region39: #{_forward_pair.7} parent=1 // pred_check_branch
      %1036 = sbr.rel (0) target = $region41
    $region40: #{_forward_pair.7} parent=1 // pred_region
      %1037 = dma.done [#allocation3], 32
    $region41: #{_forward_pair.7} parent=1 // pred_fallthru
      _
    %1038 = vsyncpa [#allocation3], 1

</llo_original>
